<compile_context>
chip_gen: v7x
topology: tpu7x:2x2x1
jax: 0.10.0
libtpu: 0.0.40
codegen_flags: <defaults>
</compile_context>

<pallas_src>
import functools

import jax
import jax.numpy as jnp
from jax.experimental import pallas as pl
from jax.experimental.pallas import tpu as pltpu

NEG_SLOPE = 0.05


def _lrelu(v):
    return jnp.where(v >= 0, v, NEG_SLOPE * v)


def imd_kernel(x_ref, m_ref,
               w1_ref, b1_ref, w2_ref, b2_ref, w3_ref, b3_ref,
               w4_ref, b4_ref, w5_ref, b5_ref,
               wd1_ref, bd1_ref, wd2_ref, bd2_ref,
               out_ref, mix_ref, *, W, C, Cd, N):
    """One batch element.  All activations are (C, N) with N = H*W on lanes."""

    def shift_lanes(a, s):
        # out[:, n] = a[:, (n + s) % N]; wrapped lanes are zeroed by the tap
        # mask below.  (Pure lane rotation — XLU work, no padded buffer.)
        s = s % N
        if s == 0:
            return a
        return jnp.concatenate([a[:, s:], a[:, :s]], axis=1)

    def conv3x3(act, w_ref, b_ref):
        # im2col: 9 shifted copies stacked along sublanes -> (9*C, N), then a
        # single (Cout, 9*C) x (9*C, N) MXU matmul (K = 9*C instead of nine
        # tiny K<=16 pushes).
        taps = []
        for kh in range(3):
            for kw in range(3):
                s = (kh - 1) * W + (kw - 1)
                tap = shift_lanes(act, s)
                if s != 0:
                    t = kh * 3 + kw
                    tap = tap * m_ref[t:t + 1, :]        # zero out-of-image lanes
                taps.append(tap)
        im2col = jnp.concatenate(taps, axis=0)           # (9*C, N)
        return jnp.dot(w_ref[...], im2col,
                       preferred_element_type=jnp.float32) + b_ref[...]

    x = x_ref[...]                                       # (C, N)

    # ---- c1..c4: distilled channels go straight into the mix scratch ----
    out_c1 = _lrelu(conv3x3(x, w1_ref, b1_ref))          # (C, N)
    mix_ref[0:Cd, :] = out_c1[:Cd, :]
    out_c2 = _lrelu(conv3x3(out_c1, w2_ref, b2_ref))     # (C, N)
    mix_ref[Cd:2 * Cd, :] = out_c2[:Cd, :]
    out_c3 = _lrelu(conv3x3(out_c2, w3_ref, b3_ref))     # (C, N)
    mix_ref[2 * Cd:3 * Cd, :] = out_c3[:Cd, :]
    mix_ref[3 * Cd:, :] = conv3x3(out_c3, w4_ref, b4_ref)  # (Cd, N), no act
    out = mix_ref[...]                                   # (C, N)

    # ---- CCA: per-channel (stdv + mean), 1x1 squeeze/excite on the VPU ----
    inv_n = 1.0 / float(N)
    mean = jnp.sum(out, axis=1, keepdims=True) * inv_n   # (C, 1)
    var = jnp.sum((out - mean) ** 2, axis=1, keepdims=True) * inv_n
    y = jnp.sqrt(var) + mean                             # (C, 1)
    y1 = jnp.maximum(
        jnp.sum(wd1_ref[...] * y, axis=0, keepdims=True) + bd1_ref[...],
        0.0)                                             # (1, Cred)
    y2 = jax.nn.sigmoid(
        jnp.sum(wd2_ref[...] * y1, axis=1, keepdims=True) + bd2_ref[...])  # (C,1)
    cca = out * y2                                       # (C, N)

    # ---- c5 (1x1 conv) + residual ----
    fused = jnp.dot(w5_ref[...], cca,
                    preferred_element_type=jnp.float32) + b5_ref[...]
    out_ref[...] = (fused + x).astype(out_ref.dtype)


def _fuse_conv_weight(w, cin_offset, C):
    """(Cout, Cin, 3, 3) torch conv weight -> (Cout, 9*C) im2col weight.

    Tap t = kh*3+kw occupies columns [t*C + cin_offset, t*C + cin_offset + Cin);
    all other columns are zero (they line up with channels this conv does not
    consume, e.g. the distilled channels for c2/c3/c4).
    """
    cout, cin = w.shape[0], w.shape[1]
    wf = jnp.zeros((cout, 9 * C), jnp.float32)
    for kh in range(3):
        for kw in range(3):
            t = kh * 3 + kw
            wf = wf.at[:, t * C + cin_offset:t * C + cin_offset + cin].set(
                w[:, :, kh, kw])
    return wf


def _tap_masks(H, W):
    """(9, H*W) float mask: 1 where source pixel (h+dh, w+dw) is inside."""
    n = jnp.arange(H * W)
    hh, ww = n // W, n % W
    rows = []
    for kh in range(3):
        for kw in range(3):
            dh, dw = kh - 1, kw - 1
            valid = ((hh + dh >= 0) & (hh + dh < H) &
                     (ww + dw >= 0) & (ww + dw < W))
            rows.append(valid.astype(jnp.float32))
    return jnp.stack(rows, axis=0)


def _prepare_kernel_params(params, C, H, W):
    (w1, b1, w2, b2, w3, b3, w4, b4, w5, b5, wd1, bd1, wd2, bd2) = params
    Cd = C // 4
    col = lambda b: b.reshape(-1, 1).astype(jnp.float32)
    return [
        _tap_masks(H, W),
        _fuse_conv_weight(w1, 0, C), col(b1),
        _fuse_conv_weight(w2, Cd, C), col(b2),
        _fuse_conv_weight(w3, Cd, C), col(b3),
        _fuse_conv_weight(w4, Cd, C), col(b4),
        w5.astype(jnp.float32), col(b5),                    # (C, C), (C, 1)
        wd1.T.astype(jnp.float32),                          # (C, Cred)
        bd1.reshape(1, -1).astype(jnp.float32),             # (1, Cred)
        wd2.astype(jnp.float32), col(bd2),                  # (C, Cred), (C, 1)
    ]


def imd_forward(x, params):
    """x: (B, C, H, W) float32 (NCHW, same as the PyTorch module)."""
    B, C, H, W = x.shape
    N = H * W
    Cd = C // 4
    kparams = _prepare_kernel_params(params, C, H, W)
    x_flat = x.reshape(B, C, N)                             # no transpose needed

    kernel = functools.partial(imd_kernel, W=W, C=C, Cd=Cd, N=N)

    in_specs = [pl.BlockSpec((None, C, N), lambda b: (b, 0, 0))]
    for p in kparams:
        in_specs.append(pl.BlockSpec(p.shape, lambda b, nd=p.ndim: (0,) * nd))

    out = pl.pallas_call(
        kernel,
        out_shape=jax.ShapeDtypeStruct((B, C, N), jnp.float32),
        grid_spec=pltpu.PrefetchScalarGridSpec(
            num_scalar_prefetch=0,
            grid=(B,),
            in_specs=in_specs,
            out_specs=pl.BlockSpec((None, C, N), lambda b: (b, 0, 0)),
            scratch_shapes=[pltpu.VMEM((C, N), jnp.float32)],
        ),
        compiler_params=pltpu.CompilerParams(
            dimension_semantics=("parallel",)),   # one image per TC on v7x
    )(x_flat, *kparams)
    return out.reshape(B, C, H, W)


def init_params(key, C):
    """Deterministic synthetic parameters in PyTorch layouts."""
    Cd = C // 4
    Cr = C - Cd
    Cred = max(C // 16, 1)
    shapes = [
        (C, C, 3, 3), (C,),       # c1
        (C, Cr, 3, 3), (C,),      # c2
        (C, Cr, 3, 3), (C,),      # c3
        (Cd, Cr, 3, 3), (Cd,),    # c4
        (C, C), (C,),             # c5 (1x1)
        (Cred, C), (Cred,),       # cca.conv_du[0] (1x1)
        (C, Cred), (C,),          # cca.conv_du[2] (1x1)
    ]
    keys = jax.random.split(key, len(shapes))
    return tuple(jax.random.normal(k, s, jnp.float32) * 0.1
                 for k, s in zip(keys, shapes))


# ---------------- pure-JAX reference (for correctness check) ----------------
def _conv3_ref(x, w, b):
    out = jax.lax.conv_general_dilated(
        x, w, window_strides=(1, 1), padding=[(1, 1), (1, 1)],
        dimension_numbers=('NCHW', 'OIHW', 'NCHW'))
    return out + b.reshape(1, -1, 1, 1)


def imd_ref(x, params):
    (w1, b1, w2, b2, w3, b3, w4, b4, w5, b5, wd1, bd1, wd2, bd2) = params
    C = x.shape[1]
    Cd = C // 4
    lrelu = lambda v: jnp.where(v >= 0, v, NEG_SLOPE * v)
    out_c1 = lrelu(_conv3_ref(x, w1, b1))
    d1, r1 = out_c1[:, :Cd], out_c1[:, Cd:]
    out_c2 = lrelu(_conv3_ref(r1, w2, b2))
    d2, r2 = out_c2[:, :Cd], out_c2[:, Cd:]
    out_c3 = lrelu(_conv3_ref(r2, w3, b3))
    d3, r3 = out_c3[:, :Cd], out_c3[:, Cd:]
    out_c4 = _conv3_ref(r3, w4, b4)
    out = jnp.concatenate([d1, d2, d3, out_c4], axis=1)
    mean = jnp.mean(out, axis=(2, 3), keepdims=True)
    var = jnp.mean((out - mean) ** 2, axis=(2, 3), keepdims=True)
    y = jnp.sqrt(var) + mean
    y1 = jnp.maximum(
        jnp.einsum('bchw,oc->bohw', y, wd1) + bd1.reshape(1, -1, 1, 1), 0.0)
    y2 = jax.nn.sigmoid(
        jnp.einsum('bchw,oc->bohw', y1, wd2) + bd2.reshape(1, -1, 1, 1))
    cca = out * y2
    fused = jnp.einsum('bchw,oc->bohw', cca, w5) + b5.reshape(1, -1, 1, 1)
    return fused + x


if __name__ == "__main__":
    B, C, H, W = 2, 16, 16, 16   # NCHW, equivalent to torch IMDModule(16)
    key = jax.random.PRNGKey(0)
    kx, kp = jax.random.split(key)
    x = jax.random.normal(kx, (B, C, H, W), jnp.float32)
    params = init_params(kp, C)

    out = jax.block_until_ready(imd_forward(x, params))
    ref = jax.block_until_ready(imd_ref(x, params))
    max_err = float(jnp.max(jnp.abs(out - ref)))
    assert max_err < 2e-4, f"mismatch vs JAX reference: {max_err}"

    print("KERNEL_OK")
</pallas_src>

<mosaic_0001>
module attributes {stable_mosaic.version = 11 : i64} {
  func.func @imd_kernel(%arg0: i32, %arg1: memref<1x16x256xf32, #tpu.memory_space<vmem>>, %arg2: memref<9x256xf32, #tpu.memory_space<vmem>>, %arg3: memref<16x144xf32, #tpu.memory_space<vmem>>, %arg4: memref<16x1xf32, #tpu.memory_space<vmem>>, %arg5: memref<16x144xf32, #tpu.memory_space<vmem>>, %arg6: memref<16x1xf32, #tpu.memory_space<vmem>>, %arg7: memref<16x144xf32, #tpu.memory_space<vmem>>, %arg8: memref<16x1xf32, #tpu.memory_space<vmem>>, %arg9: memref<4x144xf32, #tpu.memory_space<vmem>>, %arg10: memref<4x1xf32, #tpu.memory_space<vmem>>, %arg11: memref<16x16xf32, #tpu.memory_space<vmem>>, %arg12: memref<16x1xf32, #tpu.memory_space<vmem>>, %arg13: memref<16x1xf32, #tpu.memory_space<vmem>>, %arg14: memref<1x1xf32, #tpu.memory_space<vmem>>, %arg15: memref<16x1xf32, #tpu.memory_space<vmem>>, %arg16: memref<16x1xf32, #tpu.memory_space<vmem>>, %arg17: memref<1x16x256xf32, #tpu.memory_space<vmem>>, %arg18: memref<16x256xf32, #tpu.memory_space<vmem>>) attributes {dimension_semantics = [#tpu.dimension_semantics<parallel>], iteration_bounds = array<i64: 2>, scalar_prefetch = 0 : i64, scratch_operands = 1 : i64, tpu.core_type = #tpu.core_type<tc>, window_params = [{transform_indices = @transform_0, window_bounds = array<i64: 1, 16, 256>}, {pipeline_mode = #tpu.pipeline_mode<synchronous>, transform_indices = @transform_1, window_bounds = array<i64: 9, 256>}, {pipeline_mode = #tpu.pipeline_mode<synchronous>, transform_indices = @transform_2, window_bounds = array<i64: 16, 144>}, {pipeline_mode = #tpu.pipeline_mode<synchronous>, transform_indices = @transform_3, window_bounds = array<i64: 16, 1>}, {pipeline_mode = #tpu.pipeline_mode<synchronous>, transform_indices = @transform_4, window_bounds = array<i64: 16, 144>}, {pipeline_mode = #tpu.pipeline_mode<synchronous>, transform_indices = @transform_5, window_bounds = array<i64: 16, 1>}, {pipeline_mode = #tpu.pipeline_mode<synchronous>, transform_indices = @transform_6, window_bounds = array<i64: 16, 144>}, {pipeline_mode = #tpu.pipeline_mode<synchronous>, transform_indices = @transform_7, window_bounds = array<i64: 16, 1>}, {pipeline_mode = #tpu.pipeline_mode<synchronous>, transform_indices = @transform_8, window_bounds = array<i64: 4, 144>}, {pipeline_mode = #tpu.pipeline_mode<synchronous>, transform_indices = @transform_9, window_bounds = array<i64: 4, 1>}, {pipeline_mode = #tpu.pipeline_mode<synchronous>, transform_indices = @transform_10, window_bounds = array<i64: 16, 16>}, {pipeline_mode = #tpu.pipeline_mode<synchronous>, transform_indices = @transform_11, window_bounds = array<i64: 16, 1>}, {pipeline_mode = #tpu.pipeline_mode<synchronous>, transform_indices = @transform_12, window_bounds = array<i64: 16, 1>}, {pipeline_mode = #tpu.pipeline_mode<synchronous>, transform_indices = @transform_13, window_bounds = array<i64: 1, 1>}, {pipeline_mode = #tpu.pipeline_mode<synchronous>, transform_indices = @transform_14, window_bounds = array<i64: 16, 1>}, {pipeline_mode = #tpu.pipeline_mode<synchronous>, transform_indices = @transform_15, window_bounds = array<i64: 16, 1>}, {transform_indices = @transform_16, window_bounds = array<i64: 1, 16, 256>}]} {
    %c0 = arith.constant 0 : index
    %c0_0 = arith.constant 0 : index
    %c0_1 = arith.constant 0 : index
    %0 = vector.load %arg1[%c0, %c0_0, %c0_1] : memref<1x16x256xf32, #tpu.memory_space<vmem>>, vector<1x16x256xf32>
    %1 = vector.shape_cast %0 : vector<1x16x256xf32> to vector<16x256xf32>
    %2 = vector.extract_strided_slice %1 {offsets = [0, 239], sizes = [16, 17], strides = [1, 1]} : vector<16x256xf32> to vector<16x17xf32>
    %3 = vector.extract_strided_slice %1 {offsets = [0, 0], sizes = [16, 239], strides = [1, 1]} : vector<16x256xf32> to vector<16x239xf32>
    %4 = tpu.concatenate %2, %3 in 1 : vector<16x17xf32>, vector<16x239xf32> -> vector<16x256xf32>
    %c0_2 = arith.constant 0 : index
    %c0_3 = arith.constant 0 : index
    %5 = vector.load %arg2[%c0_2, %c0_3] : memref<9x256xf32, #tpu.memory_space<vmem>>, vector<1x256xf32>
    %6 = vector.broadcast %5 : vector<1x256xf32> to vector<16x256xf32>
    %7 = arith.mulf %4, %6 : vector<16x256xf32>
    %8 = vector.extract_strided_slice %1 {offsets = [0, 240], sizes = [16, 16], strides = [1, 1]} : vector<16x256xf32> to vector<16x16xf32>
    %9 = vector.extract_strided_slice %1 {offsets = [0, 0], sizes = [16, 240], strides = [1, 1]} : vector<16x256xf32> to vector<16x240xf32>
    %10 = tpu.concatenate %8, %9 in 1 : vector<16x16xf32>, vector<16x240xf32> -> vector<16x256xf32>
    %c1 = arith.constant 1 : index
    %c0_4 = arith.constant 0 : index
    %11 = vector.load %arg2[%c1, %c0_4] : memref<9x256xf32, #tpu.memory_space<vmem>>, vector<1x256xf32>
    %12 = vector.broadcast %11 : vector<1x256xf32> to vector<16x256xf32>
    %13 = arith.mulf %10, %12 : vector<16x256xf32>
    %14 = vector.extract_strided_slice %1 {offsets = [0, 241], sizes = [16, 15], strides = [1, 1]} : vector<16x256xf32> to vector<16x15xf32>
    %15 = vector.extract_strided_slice %1 {offsets = [0, 0], sizes = [16, 241], strides = [1, 1]} : vector<16x256xf32> to vector<16x241xf32>
    %16 = tpu.concatenate %14, %15 in 1 : vector<16x15xf32>, vector<16x241xf32> -> vector<16x256xf32>
    %c2 = arith.constant 2 : index
    %c0_5 = arith.constant 0 : index
    %17 = vector.load %arg2[%c2, %c0_5] : memref<9x256xf32, #tpu.memory_space<vmem>>, vector<1x256xf32>
    %18 = vector.broadcast %17 : vector<1x256xf32> to vector<16x256xf32>
    %19 = arith.mulf %16, %18 : vector<16x256xf32>
    %20 = vector.extract_strided_slice %1 {offsets = [0, 255], sizes = [16, 1], strides = [1, 1]} : vector<16x256xf32> to vector<16x1xf32>
    %21 = vector.extract_strided_slice %1 {offsets = [0, 0], sizes = [16, 255], strides = [1, 1]} : vector<16x256xf32> to vector<16x255xf32>
    %22 = tpu.concatenate %20, %21 in 1 : vector<16x1xf32>, vector<16x255xf32> -> vector<16x256xf32>
    %c3 = arith.constant 3 : index
    %c0_6 = arith.constant 0 : index
    %23 = vector.load %arg2[%c3, %c0_6] : memref<9x256xf32, #tpu.memory_space<vmem>>, vector<1x256xf32>
    %24 = vector.broadcast %23 : vector<1x256xf32> to vector<16x256xf32>
    %25 = arith.mulf %22, %24 : vector<16x256xf32>
    %26 = vector.extract_strided_slice %1 {offsets = [0, 1], sizes = [16, 255], strides = [1, 1]} : vector<16x256xf32> to vector<16x255xf32>
    %27 = vector.extract_strided_slice %1 {offsets = [0, 0], sizes = [16, 1], strides = [1, 1]} : vector<16x256xf32> to vector<16x1xf32>
    %28 = tpu.concatenate %26, %27 in 1 : vector<16x255xf32>, vector<16x1xf32> -> vector<16x256xf32>
    %c5 = arith.constant 5 : index
    %c0_7 = arith.constant 0 : index
    %29 = vector.load %arg2[%c5, %c0_7] : memref<9x256xf32, #tpu.memory_space<vmem>>, vector<1x256xf32>
    %30 = vector.broadcast %29 : vector<1x256xf32> to vector<16x256xf32>
    %31 = arith.mulf %28, %30 : vector<16x256xf32>
    %32 = vector.extract_strided_slice %1 {offsets = [0, 15], sizes = [16, 241], strides = [1, 1]} : vector<16x256xf32> to vector<16x241xf32>
    %33 = vector.extract_strided_slice %1 {offsets = [0, 0], sizes = [16, 15], strides = [1, 1]} : vector<16x256xf32> to vector<16x15xf32>
    %34 = tpu.concatenate %32, %33 in 1 : vector<16x241xf32>, vector<16x15xf32> -> vector<16x256xf32>
    %c6 = arith.constant 6 : index
    %c0_8 = arith.constant 0 : index
    %35 = vector.load %arg2[%c6, %c0_8] : memref<9x256xf32, #tpu.memory_space<vmem>>, vector<1x256xf32>
    %36 = vector.broadcast %35 : vector<1x256xf32> to vector<16x256xf32>
    %37 = arith.mulf %34, %36 : vector<16x256xf32>
    %38 = vector.extract_strided_slice %1 {offsets = [0, 16], sizes = [16, 240], strides = [1, 1]} : vector<16x256xf32> to vector<16x240xf32>
    %39 = vector.extract_strided_slice %1 {offsets = [0, 0], sizes = [16, 16], strides = [1, 1]} : vector<16x256xf32> to vector<16x16xf32>
    %40 = tpu.concatenate %38, %39 in 1 : vector<16x240xf32>, vector<16x16xf32> -> vector<16x256xf32>
    %c7 = arith.constant 7 : index
    %c0_9 = arith.constant 0 : index
    %41 = vector.load %arg2[%c7, %c0_9] : memref<9x256xf32, #tpu.memory_space<vmem>>, vector<1x256xf32>
    %42 = vector.broadcast %41 : vector<1x256xf32> to vector<16x256xf32>
    %43 = arith.mulf %40, %42 : vector<16x256xf32>
    %44 = vector.extract_strided_slice %1 {offsets = [0, 17], sizes = [16, 239], strides = [1, 1]} : vector<16x256xf32> to vector<16x239xf32>
    %45 = vector.extract_strided_slice %1 {offsets = [0, 0], sizes = [16, 17], strides = [1, 1]} : vector<16x256xf32> to vector<16x17xf32>
    %46 = tpu.concatenate %44, %45 in 1 : vector<16x239xf32>, vector<16x17xf32> -> vector<16x256xf32>
    %c8 = arith.constant 8 : index
    %c0_10 = arith.constant 0 : index
    %47 = vector.load %arg2[%c8, %c0_10] : memref<9x256xf32, #tpu.memory_space<vmem>>, vector<1x256xf32>
    %48 = vector.broadcast %47 : vector<1x256xf32> to vector<16x256xf32>
    %49 = arith.mulf %46, %48 : vector<16x256xf32>
    %50 = tpu.concatenate %7, %13, %19, %25, %1, %31, %37, %43, %49 in 0 : vector<16x256xf32>, vector<16x256xf32>, vector<16x256xf32>, vector<16x256xf32>, vector<16x256xf32>, vector<16x256xf32>, vector<16x256xf32>, vector<16x256xf32>, vector<16x256xf32> -> vector<144x256xf32>
    %c0_11 = arith.constant 0 : index
    %c0_12 = arith.constant 0 : index
    %51 = vector.load %arg3[%c0_11, %c0_12] : memref<16x144xf32, #tpu.memory_space<vmem>>, vector<16x144xf32>
    %cst = arith.constant dense<0.000000e+00> : vector<16x256xf32>
    %52 = tpu.matmul %51, %50, %cst {dimension_numbers = #tpu.dot_dimension_numbers<[1], [0], [0], [1], [0, 0, 1, 1], [], []>} : vector<16x144xf32>, vector<144x256xf32>, vector<16x256xf32> -> vector<16x256xf32>
    %c0_13 = arith.constant 0 : index
    %c0_14 = arith.constant 0 : index
    %53 = vector.load %arg4[%c0_13, %c0_14] : memref<16x1xf32, #tpu.memory_space<vmem>>, vector<16x1xf32>
    %54 = vector.broadcast %53 : vector<16x1xf32> to vector<16x256xf32>
    %55 = arith.addf %52, %54 : vector<16x256xf32>
    %cst_15 = arith.constant 0.000000e+00 : f32
    %56 = vector.broadcast %cst_15 : f32 to vector<16x256xf32>
    %57 = arith.cmpf oge, %55, %56 : vector<16x256xf32>
    %cst_16 = arith.constant 5.000000e-02 : f32
    %58 = vector.broadcast %cst_16 : f32 to vector<16x256xf32>
    %59 = arith.mulf %58, %55 : vector<16x256xf32>
    %60 = arith.select %57, %55, %59 : vector<16x256xi1>, vector<16x256xf32>
    %61 = vector.extract_strided_slice %60 {offsets = [0, 0], sizes = [4, 256], strides = [1, 1]} : vector<16x256xf32> to vector<4x256xf32>
    %c0_17 = arith.constant 0 : index
    %c0_18 = arith.constant 0 : index
    %62 = vector.load %arg18[%c0_17, %c0_18] : memref<16x256xf32, #tpu.memory_space<vmem>>, vector<4x256xf32>
    tpu.vector_store %arg18[%c0_17, %c0_18], %61 {strides = array<i32>} : memref<16x256xf32, #tpu.memory_space<vmem>>, vector<4x256xf32>,
    %63 = vector.extract_strided_slice %60 {offsets = [0, 239], sizes = [16, 17], strides = [1, 1]} : vector<16x256xf32> to vector<16x17xf32>
    %64 = vector.extract_strided_slice %60 {offsets = [0, 0], sizes = [16, 239], strides = [1, 1]} : vector<16x256xf32> to vector<16x239xf32>
    %65 = tpu.concatenate %63, %64 in 1 : vector<16x17xf32>, vector<16x239xf32> -> vector<16x256xf32>
    %c0_19 = arith.constant 0 : index
    %c0_20 = arith.constant 0 : index
    %66 = vector.load %arg2[%c0_19, %c0_20] : memref<9x256xf32, #tpu.memory_space<vmem>>, vector<1x256xf32>
    %67 = vector.broadcast %66 : vector<1x256xf32> to vector<16x256xf32>
    %68 = arith.mulf %65, %67 : vector<16x256xf32>
    %69 = vector.extract_strided_slice %60 {offsets = [0, 240], sizes = [16, 16], strides = [1, 1]} : vector<16x256xf32> to vector<16x16xf32>
    %70 = vector.extract_strided_slice %60 {offsets = [0, 0], sizes = [16, 240], strides = [1, 1]} : vector<16x256xf32> to vector<16x240xf32>
    %71 = tpu.concatenate %69, %70 in 1 : vector<16x16xf32>, vector<16x240xf32> -> vector<16x256xf32>
    %c1_21 = arith.constant 1 : index
    %c0_22 = arith.constant 0 : index
    %72 = vector.load %arg2[%c1_21, %c0_22] : memref<9x256xf32, #tpu.memory_space<vmem>>, vector<1x256xf32>
    %73 = vector.broadcast %72 : vector<1x256xf32> to vector<16x256xf32>
    %74 = arith.mulf %71, %73 : vector<16x256xf32>
    %75 = vector.extract_strided_slice %60 {offsets = [0, 241], sizes = [16, 15], strides = [1, 1]} : vector<16x256xf32> to vector<16x15xf32>
    %76 = vector.extract_strided_slice %60 {offsets = [0, 0], sizes = [16, 241], strides = [1, 1]} : vector<16x256xf32> to vector<16x241xf32>
    %77 = tpu.concatenate %75, %76 in 1 : vector<16x15xf32>, vector<16x241xf32> -> vector<16x256xf32>
    %c2_23 = arith.constant 2 : index
    %c0_24 = arith.constant 0 : index
    %78 = vector.load %arg2[%c2_23, %c0_24] : memref<9x256xf32, #tpu.memory_space<vmem>>, vector<1x256xf32>
    %79 = vector.broadcast %78 : vector<1x256xf32> to vector<16x256xf32>
    %80 = arith.mulf %77, %79 : vector<16x256xf32>
    %81 = vector.extract_strided_slice %60 {offsets = [0, 255], sizes = [16, 1], strides = [1, 1]} : vector<16x256xf32> to vector<16x1xf32>
    %82 = vector.extract_strided_slice %60 {offsets = [0, 0], sizes = [16, 255], strides = [1, 1]} : vector<16x256xf32> to vector<16x255xf32>
    %83 = tpu.concatenate %81, %82 in 1 : vector<16x1xf32>, vector<16x255xf32> -> vector<16x256xf32>
    %c3_25 = arith.constant 3 : index
    %c0_26 = arith.constant 0 : index
    %84 = vector.load %arg2[%c3_25, %c0_26] : memref<9x256xf32, #tpu.memory_space<vmem>>, vector<1x256xf32>
    %85 = vector.broadcast %84 : vector<1x256xf32> to vector<16x256xf32>
    %86 = arith.mulf %83, %85 : vector<16x256xf32>
    %87 = vector.extract_strided_slice %60 {offsets = [0, 1], sizes = [16, 255], strides = [1, 1]} : vector<16x256xf32> to vector<16x255xf32>
    %88 = vector.extract_strided_slice %60 {offsets = [0, 0], sizes = [16, 1], strides = [1, 1]} : vector<16x256xf32> to vector<16x1xf32>
    %89 = tpu.concatenate %87, %88 in 1 : vector<16x255xf32>, vector<16x1xf32> -> vector<16x256xf32>
    %c5_27 = arith.constant 5 : index
    %c0_28 = arith.constant 0 : index
    %90 = vector.load %arg2[%c5_27, %c0_28] : memref<9x256xf32, #tpu.memory_space<vmem>>, vector<1x256xf32>
    %91 = vector.broadcast %90 : vector<1x256xf32> to vector<16x256xf32>
    %92 = arith.mulf %89, %91 : vector<16x256xf32>
    %93 = vector.extract_strided_slice %60 {offsets = [0, 15], sizes = [16, 241], strides = [1, 1]} : vector<16x256xf32> to vector<16x241xf32>
    %94 = vector.extract_strided_slice %60 {offsets = [0, 0], sizes = [16, 15], strides = [1, 1]} : vector<16x256xf32> to vector<16x15xf32>
    %95 = tpu.concatenate %93, %94 in 1 : vector<16x241xf32>, vector<16x15xf32> -> vector<16x256xf32>
    %c6_29 = arith.constant 6 : index
    %c0_30 = arith.constant 0 : index
    %96 = vector.load %arg2[%c6_29, %c0_30] : memref<9x256xf32, #tpu.memory_space<vmem>>, vector<1x256xf32>
    %97 = vector.broadcast %96 : vector<1x256xf32> to vector<16x256xf32>
    %98 = arith.mulf %95, %97 : vector<16x256xf32>
    %99 = vector.extract_strided_slice %60 {offsets = [0, 16], sizes = [16, 240], strides = [1, 1]} : vector<16x256xf32> to vector<16x240xf32>
    %100 = vector.extract_strided_slice %60 {offsets = [0, 0], sizes = [16, 16], strides = [1, 1]} : vector<16x256xf32> to vector<16x16xf32>
    %101 = tpu.concatenate %99, %100 in 1 : vector<16x240xf32>, vector<16x16xf32> -> vector<16x256xf32>
    %c7_31 = arith.constant 7 : index
    %c0_32 = arith.constant 0 : index
    %102 = vector.load %arg2[%c7_31, %c0_32] : memref<9x256xf32, #tpu.memory_space<vmem>>, vector<1x256xf32>
    %103 = vector.broadcast %102 : vector<1x256xf32> to vector<16x256xf32>
    %104 = arith.mulf %101, %103 : vector<16x256xf32>
    %105 = vector.extract_strided_slice %60 {offsets = [0, 17], sizes = [16, 239], strides = [1, 1]} : vector<16x256xf32> to vector<16x239xf32>
    %106 = vector.extract_strided_slice %60 {offsets = [0, 0], sizes = [16, 17], strides = [1, 1]} : vector<16x256xf32> to vector<16x17xf32>
    %107 = tpu.concatenate %105, %106 in 1 : vector<16x239xf32>, vector<16x17xf32> -> vector<16x256xf32>
    %c8_33 = arith.constant 8 : index
    %c0_34 = arith.constant 0 : index
    %108 = vector.load %arg2[%c8_33, %c0_34] : memref<9x256xf32, #tpu.memory_space<vmem>>, vector<1x256xf32>
    %109 = vector.broadcast %108 : vector<1x256xf32> to vector<16x256xf32>
    %110 = arith.mulf %107, %109 : vector<16x256xf32>
    %111 = tpu.concatenate %68, %74, %80, %86, %60, %92, %98, %104, %110 in 0 : vector<16x256xf32>, vector<16x256xf32>, vector<16x256xf32>, vector<16x256xf32>, vector<16x256xf32>, vector<16x256xf32>, vector<16x256xf32>, vector<16x256xf32>, vector<16x256xf32> -> vector<144x256xf32>
    %c0_35 = arith.constant 0 : index
    %c0_36 = arith.constant 0 : index
    %112 = vector.load %arg5[%c0_35, %c0_36] : memref<16x144xf32, #tpu.memory_space<vmem>>, vector<16x144xf32>
    %cst_37 = arith.constant dense<0.000000e+00> : vector<16x256xf32>
    %113 = tpu.matmul %112, %111, %cst_37 {dimension_numbers = #tpu.dot_dimension_numbers<[1], [0], [0], [1], [0, 0, 1, 1], [], []>} : vector<16x144xf32>, vector<144x256xf32>, vector<16x256xf32> -> vector<16x256xf32>
    %c0_38 = arith.constant 0 : index
    %c0_39 = arith.constant 0 : index
    %114 = vector.load %arg6[%c0_38, %c0_39] : memref<16x1xf32, #tpu.memory_space<vmem>>, vector<16x1xf32>
    %115 = vector.broadcast %114 : vector<16x1xf32> to vector<16x256xf32>
    %116 = arith.addf %113, %115 : vector<16x256xf32>
    %cst_40 = arith.constant 0.000000e+00 : f32
    %117 = vector.broadcast %cst_40 : f32 to vector<16x256xf32>
    %118 = arith.cmpf oge, %116, %117 : vector<16x256xf32>
    %cst_41 = arith.constant 5.000000e-02 : f32
    %119 = vector.broadcast %cst_41 : f32 to vector<16x256xf32>
    %120 = arith.mulf %119, %116 : vector<16x256xf32>
    %121 = arith.select %118, %116, %120 : vector<16x256xi1>, vector<16x256xf32>
    %122 = vector.extract_strided_slice %121 {offsets = [0, 0], sizes = [4, 256], strides = [1, 1]} : vector<16x256xf32> to vector<4x256xf32>
    %c4 = arith.constant 4 : index
    %c0_42 = arith.constant 0 : index
    %123 = vector.load %arg18[%c4, %c0_42] : memref<16x256xf32, #tpu.memory_space<vmem>>, vector<4x256xf32>
    tpu.vector_store %arg18[%c4, %c0_42], %122 {strides = array<i32>} : memref<16x256xf32, #tpu.memory_space<vmem>>, vector<4x256xf32>,
    %124 = vector.extract_strided_slice %121 {offsets = [0, 239], sizes = [16, 17], strides = [1, 1]} : vector<16x256xf32> to vector<16x17xf32>
    %125 = vector.extract_strided_slice %121 {offsets = [0, 0], sizes = [16, 239], strides = [1, 1]} : vector<16x256xf32> to vector<16x239xf32>
    %126 = tpu.concatenate %124, %125 in 1 : vector<16x17xf32>, vector<16x239xf32> -> vector<16x256xf32>
    %c0_43 = arith.constant 0 : index
    %c0_44 = arith.constant 0 : index
    %127 = vector.load %arg2[%c0_43, %c0_44] : memref<9x256xf32, #tpu.memory_space<vmem>>, vector<1x256xf32>
    %128 = vector.broadcast %127 : vector<1x256xf32> to vector<16x256xf32>
    %129 = arith.mulf %126, %128 : vector<16x256xf32>
    %130 = vector.extract_strided_slice %121 {offsets = [0, 240], sizes = [16, 16], strides = [1, 1]} : vector<16x256xf32> to vector<16x16xf32>
    %131 = vector.extract_strided_slice %121 {offsets = [0, 0], sizes = [16, 240], strides = [1, 1]} : vector<16x256xf32> to vector<16x240xf32>
    %132 = tpu.concatenate %130, %131 in 1 : vector<16x16xf32>, vector<16x240xf32> -> vector<16x256xf32>
    %c1_45 = arith.constant 1 : index
    %c0_46 = arith.constant 0 : index
    %133 = vector.load %arg2[%c1_45, %c0_46] : memref<9x256xf32, #tpu.memory_space<vmem>>, vector<1x256xf32>
    %134 = vector.broadcast %133 : vector<1x256xf32> to vector<16x256xf32>
    %135 = arith.mulf %132, %134 : vector<16x256xf32>
    %136 = vector.extract_strided_slice %121 {offsets = [0, 241], sizes = [16, 15], strides = [1, 1]} : vector<16x256xf32> to vector<16x15xf32>
    %137 = vector.extract_strided_slice %121 {offsets = [0, 0], sizes = [16, 241], strides = [1, 1]} : vector<16x256xf32> to vector<16x241xf32>
    %138 = tpu.concatenate %136, %137 in 1 : vector<16x15xf32>, vector<16x241xf32> -> vector<16x256xf32>
    %c2_47 = arith.constant 2 : index
    %c0_48 = arith.constant 0 : index
    %139 = vector.load %arg2[%c2_47, %c0_48] : memref<9x256xf32, #tpu.memory_space<vmem>>, vector<1x256xf32>
    %140 = vector.broadcast %139 : vector<1x256xf32> to vector<16x256xf32>
    %141 = arith.mulf %138, %140 : vector<16x256xf32>
    %142 = vector.extract_strided_slice %121 {offsets = [0, 255], sizes = [16, 1], strides = [1, 1]} : vector<16x256xf32> to vector<16x1xf32>
    %143 = vector.extract_strided_slice %121 {offsets = [0, 0], sizes = [16, 255], strides = [1, 1]} : vector<16x256xf32> to vector<16x255xf32>
    %144 = tpu.concatenate %142, %143 in 1 : vector<16x1xf32>, vector<16x255xf32> -> vector<16x256xf32>
    %c3_49 = arith.constant 3 : index
    %c0_50 = arith.constant 0 : index
    %145 = vector.load %arg2[%c3_49, %c0_50] : memref<9x256xf32, #tpu.memory_space<vmem>>, vector<1x256xf32>
    %146 = vector.broadcast %145 : vector<1x256xf32> to vector<16x256xf32>
    %147 = arith.mulf %144, %146 : vector<16x256xf32>
    %148 = vector.extract_strided_slice %121 {offsets = [0, 1], sizes = [16, 255], strides = [1, 1]} : vector<16x256xf32> to vector<16x255xf32>
    %149 = vector.extract_strided_slice %121 {offsets = [0, 0], sizes = [16, 1], strides = [1, 1]} : vector<16x256xf32> to vector<16x1xf32>
    %150 = tpu.concatenate %148, %149 in 1 : vector<16x255xf32>, vector<16x1xf32> -> vector<16x256xf32>
    %c5_51 = arith.constant 5 : index
    %c0_52 = arith.constant 0 : index
    %151 = vector.load %arg2[%c5_51, %c0_52] : memref<9x256xf32, #tpu.memory_space<vmem>>, vector<1x256xf32>
    %152 = vector.broadcast %151 : vector<1x256xf32> to vector<16x256xf32>
    %153 = arith.mulf %150, %152 : vector<16x256xf32>
    %154 = vector.extract_strided_slice %121 {offsets = [0, 15], sizes = [16, 241], strides = [1, 1]} : vector<16x256xf32> to vector<16x241xf32>
    %155 = vector.extract_strided_slice %121 {offsets = [0, 0], sizes = [16, 15], strides = [1, 1]} : vector<16x256xf32> to vector<16x15xf32>
    %156 = tpu.concatenate %154, %155 in 1 : vector<16x241xf32>, vector<16x15xf32> -> vector<16x256xf32>
    %c6_53 = arith.constant 6 : index
    %c0_54 = arith.constant 0 : index
    %157 = vector.load %arg2[%c6_53, %c0_54] : memref<9x256xf32, #tpu.memory_space<vmem>>, vector<1x256xf32>
    %158 = vector.broadcast %157 : vector<1x256xf32> to vector<16x256xf32>
    %159 = arith.mulf %156, %158 : vector<16x256xf32>
    %160 = vector.extract_strided_slice %121 {offsets = [0, 16], sizes = [16, 240], strides = [1, 1]} : vector<16x256xf32> to vector<16x240xf32>
    %161 = vector.extract_strided_slice %121 {offsets = [0, 0], sizes = [16, 16], strides = [1, 1]} : vector<16x256xf32> to vector<16x16xf32>
    %162 = tpu.concatenate %160, %161 in 1 : vector<16x240xf32>, vector<16x16xf32> -> vector<16x256xf32>
    %c7_55 = arith.constant 7 : index
    %c0_56 = arith.constant 0 : index
    %163 = vector.load %arg2[%c7_55, %c0_56] : memref<9x256xf32, #tpu.memory_space<vmem>>, vector<1x256xf32>
    %164 = vector.broadcast %163 : vector<1x256xf32> to vector<16x256xf32>
    %165 = arith.mulf %162, %164 : vector<16x256xf32>
    %166 = vector.extract_strided_slice %121 {offsets = [0, 17], sizes = [16, 239], strides = [1, 1]} : vector<16x256xf32> to vector<16x239xf32>
    %167 = vector.extract_strided_slice %121 {offsets = [0, 0], sizes = [16, 17], strides = [1, 1]} : vector<16x256xf32> to vector<16x17xf32>
    %168 = tpu.concatenate %166, %167 in 1 : vector<16x239xf32>, vector<16x17xf32> -> vector<16x256xf32>
    %c8_57 = arith.constant 8 : index
    %c0_58 = arith.constant 0 : index
    %169 = vector.load %arg2[%c8_57, %c0_58] : memref<9x256xf32, #tpu.memory_space<vmem>>, vector<1x256xf32>
    %170 = vector.broadcast %169 : vector<1x256xf32> to vector<16x256xf32>
    %171 = arith.mulf %168, %170 : vector<16x256xf32>
    %172 = tpu.concatenate %129, %135, %141, %147, %121, %153, %159, %165, %171 in 0 : vector<16x256xf32>, vector<16x256xf32>, vector<16x256xf32>, vector<16x256xf32>, vector<16x256xf32>, vector<16x256xf32>, vector<16x256xf32>, vector<16x256xf32>, vector<16x256xf32> -> vector<144x256xf32>
    %c0_59 = arith.constant 0 : index
    %c0_60 = arith.constant 0 : index
    %173 = vector.load %arg7[%c0_59, %c0_60] : memref<16x144xf32, #tpu.memory_space<vmem>>, vector<16x144xf32>
    %cst_61 = arith.constant dense<0.000000e+00> : vector<16x256xf32>
    %174 = tpu.matmul %173, %172, %cst_61 {dimension_numbers = #tpu.dot_dimension_numbers<[1], [0], [0], [1], [0, 0, 1, 1], [], []>} : vector<16x144xf32>, vector<144x256xf32>, vector<16x256xf32> -> vector<16x256xf32>
    %c0_62 = arith.constant 0 : index
    %c0_63 = arith.constant 0 : index
    %175 = vector.load %arg8[%c0_62, %c0_63] : memref<16x1xf32, #tpu.memory_space<vmem>>, vector<16x1xf32>
    %176 = vector.broadcast %175 : vector<16x1xf32> to vector<16x256xf32>
    %177 = arith.addf %174, %176 : vector<16x256xf32>
    %cst_64 = arith.constant 0.000000e+00 : f32
    %178 = vector.broadcast %cst_64 : f32 to vector<16x256xf32>
    %179 = arith.cmpf oge, %177, %178 : vector<16x256xf32>
    %cst_65 = arith.constant 5.000000e-02 : f32
    %180 = vector.broadcast %cst_65 : f32 to vector<16x256xf32>
    %181 = arith.mulf %180, %177 : vector<16x256xf32>
    %182 = arith.select %179, %177, %181 : vector<16x256xi1>, vector<16x256xf32>
    %183 = vector.extract_strided_slice %182 {offsets = [0, 0], sizes = [4, 256], strides = [1, 1]} : vector<16x256xf32> to vector<4x256xf32>
    %c8_66 = arith.constant 8 : index
    %c0_67 = arith.constant 0 : index
    %184 = vector.load %arg18[%c8_66, %c0_67] : memref<16x256xf32, #tpu.memory_space<vmem>>, vector<4x256xf32>
    tpu.vector_store %arg18[%c8_66, %c0_67], %183 {strides = array<i32>} : memref<16x256xf32, #tpu.memory_space<vmem>>, vector<4x256xf32>,
    %185 = vector.extract_strided_slice %182 {offsets = [0, 239], sizes = [16, 17], strides = [1, 1]} : vector<16x256xf32> to vector<16x17xf32>
    %186 = vector.extract_strided_slice %182 {offsets = [0, 0], sizes = [16, 239], strides = [1, 1]} : vector<16x256xf32> to vector<16x239xf32>
    %187 = tpu.concatenate %185, %186 in 1 : vector<16x17xf32>, vector<16x239xf32> -> vector<16x256xf32>
    %c0_68 = arith.constant 0 : index
    %c0_69 = arith.constant 0 : index
    %188 = vector.load %arg2[%c0_68, %c0_69] : memref<9x256xf32, #tpu.memory_space<vmem>>, vector<1x256xf32>
    %189 = vector.broadcast %188 : vector<1x256xf32> to vector<16x256xf32>
    %190 = arith.mulf %187, %189 : vector<16x256xf32>
    %191 = vector.extract_strided_slice %182 {offsets = [0, 240], sizes = [16, 16], strides = [1, 1]} : vector<16x256xf32> to vector<16x16xf32>
    %192 = vector.extract_strided_slice %182 {offsets = [0, 0], sizes = [16, 240], strides = [1, 1]} : vector<16x256xf32> to vector<16x240xf32>
    %193 = tpu.concatenate %191, %192 in 1 : vector<16x16xf32>, vector<16x240xf32> -> vector<16x256xf32>
    %c1_70 = arith.constant 1 : index
    %c0_71 = arith.constant 0 : index
    %194 = vector.load %arg2[%c1_70, %c0_71] : memref<9x256xf32, #tpu.memory_space<vmem>>, vector<1x256xf32>
    %195 = vector.broadcast %194 : vector<1x256xf32> to vector<16x256xf32>
    %196 = arith.mulf %193, %195 : vector<16x256xf32>
    %197 = vector.extract_strided_slice %182 {offsets = [0, 241], sizes = [16, 15], strides = [1, 1]} : vector<16x256xf32> to vector<16x15xf32>
    %198 = vector.extract_strided_slice %182 {offsets = [0, 0], sizes = [16, 241], strides = [1, 1]} : vector<16x256xf32> to vector<16x241xf32>
    %199 = tpu.concatenate %197, %198 in 1 : vector<16x15xf32>, vector<16x241xf32> -> vector<16x256xf32>
    %c2_72 = arith.constant 2 : index
    %c0_73 = arith.constant 0 : index
    %200 = vector.load %arg2[%c2_72, %c0_73] : memref<9x256xf32, #tpu.memory_space<vmem>>, vector<1x256xf32>
    %201 = vector.broadcast %200 : vector<1x256xf32> to vector<16x256xf32>
    %202 = arith.mulf %199, %201 : vector<16x256xf32>
    %203 = vector.extract_strided_slice %182 {offsets = [0, 255], sizes = [16, 1], strides = [1, 1]} : vector<16x256xf32> to vector<16x1xf32>
    %204 = vector.extract_strided_slice %182 {offsets = [0, 0], sizes = [16, 255], strides = [1, 1]} : vector<16x256xf32> to vector<16x255xf32>
    %205 = tpu.concatenate %203, %204 in 1 : vector<16x1xf32>, vector<16x255xf32> -> vector<16x256xf32>
    %c3_74 = arith.constant 3 : index
    %c0_75 = arith.constant 0 : index
    %206 = vector.load %arg2[%c3_74, %c0_75] : memref<9x256xf32, #tpu.memory_space<vmem>>, vector<1x256xf32>
    %207 = vector.broadcast %206 : vector<1x256xf32> to vector<16x256xf32>
    %208 = arith.mulf %205, %207 : vector<16x256xf32>
    %209 = vector.extract_strided_slice %182 {offsets = [0, 1], sizes = [16, 255], strides = [1, 1]} : vector<16x256xf32> to vector<16x255xf32>
    %210 = vector.extract_strided_slice %182 {offsets = [0, 0], sizes = [16, 1], strides = [1, 1]} : vector<16x256xf32> to vector<16x1xf32>
    %211 = tpu.concatenate %209, %210 in 1 : vector<16x255xf32>, vector<16x1xf32> -> vector<16x256xf32>
    %c5_76 = arith.constant 5 : index
    %c0_77 = arith.constant 0 : index
    %212 = vector.load %arg2[%c5_76, %c0_77] : memref<9x256xf32, #tpu.memory_space<vmem>>, vector<1x256xf32>
    %213 = vector.broadcast %212 : vector<1x256xf32> to vector<16x256xf32>
    %214 = arith.mulf %211, %213 : vector<16x256xf32>
    %215 = vector.extract_strided_slice %182 {offsets = [0, 15], sizes = [16, 241], strides = [1, 1]} : vector<16x256xf32> to vector<16x241xf32>
    %216 = vector.extract_strided_slice %182 {offsets = [0, 0], sizes = [16, 15], strides = [1, 1]} : vector<16x256xf32> to vector<16x15xf32>
    %217 = tpu.concatenate %215, %216 in 1 : vector<16x241xf32>, vector<16x15xf32> -> vector<16x256xf32>
    %c6_78 = arith.constant 6 : index
    %c0_79 = arith.constant 0 : index
    %218 = vector.load %arg2[%c6_78, %c0_79] : memref<9x256xf32, #tpu.memory_space<vmem>>, vector<1x256xf32>
    %219 = vector.broadcast %218 : vector<1x256xf32> to vector<16x256xf32>
    %220 = arith.mulf %217, %219 : vector<16x256xf32>
    %221 = vector.extract_strided_slice %182 {offsets = [0, 16], sizes = [16, 240], strides = [1, 1]} : vector<16x256xf32> to vector<16x240xf32>
    %222 = vector.extract_strided_slice %182 {offsets = [0, 0], sizes = [16, 16], strides = [1, 1]} : vector<16x256xf32> to vector<16x16xf32>
    %223 = tpu.concatenate %221, %222 in 1 : vector<16x240xf32>, vector<16x16xf32> -> vector<16x256xf32>
    %c7_80 = arith.constant 7 : index
    %c0_81 = arith.constant 0 : index
    %224 = vector.load %arg2[%c7_80, %c0_81] : memref<9x256xf32, #tpu.memory_space<vmem>>, vector<1x256xf32>
    %225 = vector.broadcast %224 : vector<1x256xf32> to vector<16x256xf32>
    %226 = arith.mulf %223, %225 : vector<16x256xf32>
    %227 = vector.extract_strided_slice %182 {offsets = [0, 17], sizes = [16, 239], strides = [1, 1]} : vector<16x256xf32> to vector<16x239xf32>
    %228 = vector.extract_strided_slice %182 {offsets = [0, 0], sizes = [16, 17], strides = [1, 1]} : vector<16x256xf32> to vector<16x17xf32>
    %229 = tpu.concatenate %227, %228 in 1 : vector<16x239xf32>, vector<16x17xf32> -> vector<16x256xf32>
    %c8_82 = arith.constant 8 : index
    %c0_83 = arith.constant 0 : index
    %230 = vector.load %arg2[%c8_82, %c0_83] : memref<9x256xf32, #tpu.memory_space<vmem>>, vector<1x256xf32>
    %231 = vector.broadcast %230 : vector<1x256xf32> to vector<16x256xf32>
    %232 = arith.mulf %229, %231 : vector<16x256xf32>
    %233 = tpu.concatenate %190, %196, %202, %208, %182, %214, %220, %226, %232 in 0 : vector<16x256xf32>, vector<16x256xf32>, vector<16x256xf32>, vector<16x256xf32>, vector<16x256xf32>, vector<16x256xf32>, vector<16x256xf32>, vector<16x256xf32>, vector<16x256xf32> -> vector<144x256xf32>
    %c0_84 = arith.constant 0 : index
    %c0_85 = arith.constant 0 : index
    %234 = vector.load %arg9[%c0_84, %c0_85] : memref<4x144xf32, #tpu.memory_space<vmem>>, vector<4x144xf32>
    %cst_86 = arith.constant dense<0.000000e+00> : vector<4x256xf32>
    %235 = tpu.matmul %234, %233, %cst_86 {dimension_numbers = #tpu.dot_dimension_numbers<[1], [0], [0], [1], [0, 0, 1, 1], [], []>} : vector<4x144xf32>, vector<144x256xf32>, vector<4x256xf32> -> vector<4x256xf32>
    %c0_87 = arith.constant 0 : index
    %c0_88 = arith.constant 0 : index
    %236 = vector.load %arg10[%c0_87, %c0_88] : memref<4x1xf32, #tpu.memory_space<vmem>>, vector<4x1xf32>
    %237 = vector.broadcast %236 : vector<4x1xf32> to vector<4x256xf32>
    %238 = arith.addf %235, %237 : vector<4x256xf32>
    %c12 = arith.constant 12 : index
    %c0_89 = arith.constant 0 : index
    %239 = vector.load %arg18[%c12, %c0_89] : memref<16x256xf32, #tpu.memory_space<vmem>>, vector<4x256xf32>
    tpu.vector_store %arg18[%c12, %c0_89], %238 {strides = array<i32>} : memref<16x256xf32, #tpu.memory_space<vmem>>, vector<4x256xf32>,
    %c0_90 = arith.constant 0 : index
    %c0_91 = arith.constant 0 : index
    %240 = vector.load %arg18[%c0_90, %c0_91] : memref<16x256xf32, #tpu.memory_space<vmem>>, vector<16x256xf32>
    %cst_92 = arith.constant dense<0.000000e+00> : vector<16xf32>
    %241 = vector.multi_reduction <add>, %240, %cst_92 [1] : vector<16x256xf32> to vector<16xf32>
    %242 = vector.shape_cast %241 : vector<16xf32> to vector<16x1xf32>
    %cst_93 = arith.constant 3.906250e-03 : f32
    %243 = vector.broadcast %cst_93 : f32 to vector<16x1xf32>
    %244 = arith.mulf %242, %243 : vector<16x1xf32>
    %245 = vector.broadcast %244 : vector<16x1xf32> to vector<16x256xf32>
    %246 = arith.subf %240, %245 : vector<16x256xf32>
    %247 = arith.mulf %246, %246 : vector<16x256xf32>
    %cst_94 = arith.constant dense<0.000000e+00> : vector<16xf32>
    %248 = vector.multi_reduction <add>, %247, %cst_94 [1] : vector<16x256xf32> to vector<16xf32>
    %249 = vector.shape_cast %248 : vector<16xf32> to vector<16x1xf32>
    %cst_95 = arith.constant 3.906250e-03 : f32
    %250 = vector.broadcast %cst_95 : f32 to vector<16x1xf32>
    %251 = arith.mulf %249, %250 : vector<16x1xf32>
    %252 = math.sqrt %251 : vector<16x1xf32>
    %253 = arith.addf %252, %244 : vector<16x1xf32>
    %c0_96 = arith.constant 0 : index
    %c0_97 = arith.constant 0 : index
    %254 = vector.load %arg13[%c0_96, %c0_97] : memref<16x1xf32, #tpu.memory_space<vmem>>, vector<16x1xf32>
    %255 = arith.mulf %254, %253 : vector<16x1xf32>
    %cst_98 = arith.constant dense<0.000000e+00> : vector<1xf32>
    %256 = vector.multi_reduction <add>, %255, %cst_98 [0] : vector<16x1xf32> to vector<1xf32>
    %257 = vector.shape_cast %256 : vector<1xf32> to vector<1x1xf32>
    %c0_99 = arith.constant 0 : index
    %c0_100 = arith.constant 0 : index
    %258 = vector.load %arg14[%c0_99, %c0_100] : memref<1x1xf32, #tpu.memory_space<vmem>>, vector<1x1xf32>
    %259 = arith.addf %257, %258 : vector<1x1xf32>
    %cst_101 = arith.constant 0.000000e+00 : f32
    %260 = vector.broadcast %cst_101 : f32 to vector<1x1xf32>
    %261 = arith.maximumf %259, %260 : vector<1x1xf32>
    %c0_102 = arith.constant 0 : index
    %c0_103 = arith.constant 0 : index
    %262 = vector.load %arg15[%c0_102, %c0_103] : memref<16x1xf32, #tpu.memory_space<vmem>>, vector<16x1xf32>
    %263 = vector.broadcast %261 : vector<1x1xf32> to vector<16x1xf32>
    %264 = arith.mulf %262, %263 : vector<16x1xf32>
    %cst_104 = arith.constant dense<0.000000e+00> : vector<16xf32>
    %265 = vector.multi_reduction <add>, %264, %cst_104 [1] : vector<16x1xf32> to vector<16xf32>
    %266 = vector.shape_cast %265 : vector<16xf32> to vector<16x1xf32>
    %c0_105 = arith.constant 0 : index
    %c0_106 = arith.constant 0 : index
    %267 = vector.load %arg16[%c0_105, %c0_106] : memref<16x1xf32, #tpu.memory_space<vmem>>, vector<16x1xf32>
    %268 = arith.addf %266, %267 : vector<16x1xf32>
    %269 = arith.negf %268 : vector<16x1xf32>
    %270 = math.exp %269 : vector<16x1xf32>
    %cst_107 = arith.constant 1.000000e+00 : f32
    %271 = vector.broadcast %cst_107 : f32 to vector<16x1xf32>
    %272 = arith.addf %271, %270 : vector<16x1xf32>
    %273 = arith.divf %271, %272 : vector<16x1xf32>
    %274 = vector.broadcast %273 : vector<16x1xf32> to vector<16x256xf32>
    %275 = arith.mulf %240, %274 : vector<16x256xf32>
    %c0_108 = arith.constant 0 : index
    %c0_109 = arith.constant 0 : index
    %276 = vector.load %arg11[%c0_108, %c0_109] : memref<16x16xf32, #tpu.memory_space<vmem>>, vector<16x16xf32>
    %cst_110 = arith.constant dense<0.000000e+00> : vector<16x256xf32>
    %277 = tpu.matmul %276, %275, %cst_110 {dimension_numbers = #tpu.dot_dimension_numbers<[1], [0], [0], [1], [0, 0, 1, 1], [], []>} : vector<16x16xf32>, vector<16x256xf32>, vector<16x256xf32> -> vector<16x256xf32>
    %c0_111 = arith.constant 0 : index
    %c0_112 = arith.constant 0 : index
    %278 = vector.load %arg12[%c0_111, %c0_112] : memref<16x1xf32, #tpu.memory_space<vmem>>, vector<16x1xf32>
    %279 = vector.broadcast %278 : vector<16x1xf32> to vector<16x256xf32>
    %280 = arith.addf %277, %279 : vector<16x256xf32>
    %281 = arith.addf %280, %1 : vector<16x256xf32>
    %c0_113 = arith.constant 0 : index
    %c0_114 = arith.constant 0 : index
    %c0_115 = arith.constant 0 : index
    %282 = vector.load %arg17[%c0_113, %c0_114, %c0_115] : memref<1x16x256xf32, #tpu.memory_space<vmem>>, vector<1x16x256xf32>
    %283 = vector.shape_cast %282 : vector<1x16x256xf32> to vector<16x256xf32>
    %284 = vector.shape_cast %281 : vector<16x256xf32> to vector<1x16x256xf32>
    tpu.vector_store %arg17[%c0_113, %c0_114, %c0_115], %284 {strides = array<i32>} : memref<1x16x256xf32, #tpu.memory_space<vmem>>, vector<1x16x256xf32>,
    return
  }
  func.func @transform_0(%arg0: i32) -> (i32, i32, i32) {
    %c0_i32 = arith.constant 0 : i32
    %c0_i32_0 = arith.constant 0 : i32
    %c0_i32_1 = arith.constant 0 : i32
    return %arg0, %c0_i32, %c0_i32_0 : i32, i32, i32
  }
  func.func @transform_1(%arg0: i32) -> (i32, i32) {
    %c0_i32 = arith.constant 0 : i32
    %c0_i32_0 = arith.constant 0 : i32
    %c0_i32_1 = arith.constant 0 : i32
    return %c0_i32, %c0_i32_0 : i32, i32
  }
  func.func @transform_2(%arg0: i32) -> (i32, i32) {
    %c0_i32 = arith.constant 0 : i32
    %c0_i32_0 = arith.constant 0 : i32
    %c0_i32_1 = arith.constant 0 : i32
    return %c0_i32, %c0_i32_0 : i32, i32
  }
  func.func @transform_3(%arg0: i32) -> (i32, i32) {
    %c0_i32 = arith.constant 0 : i32
    %c0_i32_0 = arith.constant 0 : i32
    %c0_i32_1 = arith.constant 0 : i32
    return %c0_i32, %c0_i32_0 : i32, i32
  }
  func.func @transform_4(%arg0: i32) -> (i32, i32) {
    %c0_i32 = arith.constant 0 : i32
    %c0_i32_0 = arith.constant 0 : i32
    %c0_i32_1 = arith.constant 0 : i32
    return %c0_i32, %c0_i32_0 : i32, i32
  }
  func.func @transform_5(%arg0: i32) -> (i32, i32) {
    %c0_i32 = arith.constant 0 : i32
    %c0_i32_0 = arith.constant 0 : i32
    %c0_i32_1 = arith.constant 0 : i32
    return %c0_i32, %c0_i32_0 : i32, i32
  }
  func.func @transform_6(%arg0: i32) -> (i32, i32) {
    %c0_i32 = arith.constant 0 : i32
    %c0_i32_0 = arith.constant 0 : i32
    %c0_i32_1 = arith.constant 0 : i32
    return %c0_i32, %c0_i32_0 : i32, i32
  }
  func.func @transform_7(%arg0: i32) -> (i32, i32) {
    %c0_i32 = arith.constant 0 : i32
    %c0_i32_0 = arith.constant 0 : i32
    %c0_i32_1 = arith.constant 0 : i32
    return %c0_i32, %c0_i32_0 : i32, i32
  }
  func.func @transform_8(%arg0: i32) -> (i32, i32) {
    %c0_i32 = arith.constant 0 : i32
    %c0_i32_0 = arith.constant 0 : i32
    %c0_i32_1 = arith.constant 0 : i32
    return %c0_i32, %c0_i32_0 : i32, i32
  }
  func.func @transform_9(%arg0: i32) -> (i32, i32) {
    %c0_i32 = arith.constant 0 : i32
    %c0_i32_0 = arith.constant 0 : i32
    %c0_i32_1 = arith.constant 0 : i32
    return %c0_i32, %c0_i32_0 : i32, i32
  }
  func.func @transform_10(%arg0: i32) -> (i32, i32) {
    %c0_i32 = arith.constant 0 : i32
    %c0_i32_0 = arith.constant 0 : i32
    %c0_i32_1 = arith.constant 0 : i32
    return %c0_i32, %c0_i32_0 : i32, i32
  }
  func.func @transform_11(%arg0: i32) -> (i32, i32) {
    %c0_i32 = arith.constant 0 : i32
    %c0_i32_0 = arith.constant 0 : i32
    %c0_i32_1 = arith.constant 0 : i32
    return %c0_i32, %c0_i32_0 : i32, i32
  }
  func.func @transform_12(%arg0: i32) -> (i32, i32) {
    %c0_i32 = arith.constant 0 : i32
    %c0_i32_0 = arith.constant 0 : i32
    %c0_i32_1 = arith.constant 0 : i32
    return %c0_i32, %c0_i32_0 : i32, i32
  }
  func.func @transform_13(%arg0: i32) -> (i32, i32) {
    %c0_i32 = arith.constant 0 : i32
    %c0_i32_0 = arith.constant 0 : i32
    %c0_i32_1 = arith.constant 0 : i32
    return %c0_i32, %c0_i32_0 : i32, i32
  }
  func.func @transform_14(%arg0: i32) -> (i32, i32) {
    %c0_i32 = arith.constant 0 : i32
    %c0_i32_0 = arith.constant 0 : i32
    %c0_i32_1 = arith.constant 0 : i32
    return %c0_i32, %c0_i32_0 : i32, i32
  }
  func.func @transform_15(%arg0: i32) -> (i32, i32) {
    %c0_i32 = arith.constant 0 : i32
    %c0_i32_0 = arith.constant 0 : i32
    %c0_i32_1 = arith.constant 0 : i32
    return %c0_i32, %c0_i32_0 : i32, i32
  }
  func.func @transform_16(%arg0: i32) -> (i32, i32, i32) {
    %c0_i32 = arith.constant 0 : i32
    %c0_i32_0 = arith.constant 0 : i32
    %c0_i32_1 = arith.constant 0 : i32
    return %arg0, %c0_i32, %c0_i32_0 : i32, i32, i32
  }
}

</mosaic_0001>

<llo_original>
// kernel: tpu_custom_call.1
$region0: #{tpu_custom_call.1}
  #allocation0 [shape = 'u32[]', space=smem, size = 0x4, offset = 0x4, fixed_abs, tag = 'smem constant byte address 0x4 - core index']
  #allocation1 [shape = 'u32[144,128]{1,0:T(1,128)}', space=vmem, size = 0x12000, scoped, tag = 'internal scratch']
  #allocation2 [shape = 'f32[16,256]{1,0:T(8,128)}', space=vmem, size = 0x4000, scoped, tag = 'scratch operand']
  #allocation3 [shape = 'f32[1,1]{1,0:T(1,128)S(1)}', space=vmem, size = 0x200, scoped, tag = 'scoped memory for tpu_custom_call.1']
  %s0 = inlined_call_operand.vmem [shape: f32[2,16,256], index: 0, kind: input, shape index: {}]
  %s1 = inlined_call_operand.vmem [shape: f32[9,256], index: 1, kind: input, shape index: {}]
  %s2 = inlined_call_operand.vmem [shape: f32[16,144], index: 2, kind: input, shape index: {}]
  %s3 = inlined_call_operand.vmem [shape: f32[16,1], index: 3, kind: input, shape index: {}]
  %s4 = inlined_call_operand.hbm [shape: f32[16,144], index: 4, kind: input, shape index: {}]
  %s5 = inlined_call_operand.vmem [shape: f32[16,1], index: 5, kind: input, shape index: {}]
  %s6 = inlined_call_operand.hbm [shape: f32[16,144], index: 6, kind: input, shape index: {}]
  %s7 = inlined_call_operand.vmem [shape: f32[16,1], index: 7, kind: input, shape index: {}]
  %s8 = inlined_call_operand.vmem [shape: f32[4,144], index: 8, kind: input, shape index: {}]
  %s9 = inlined_call_operand.vmem [shape: f32[4,1], index: 9, kind: input, shape index: {}]
  %s10 = inlined_call_operand.vmem [shape: f32[16,16], index: 10, kind: input, shape index: {}]
  %s11 = inlined_call_operand.vmem [shape: f32[16,1], index: 11, kind: input, shape index: {}]
  %s12 = inlined_call_operand.vmem [shape: f32[16,1], index: 12, kind: input, shape index: {}]
  %s13 = inlined_call_operand.<no memory space> [shape: f32[1,1], index: 13, kind: input, shape index: {}]
  %s14 = inlined_call_operand.vmem [shape: f32[16,1], index: 14, kind: input, shape index: {}]
  %s15 = inlined_call_operand.vmem [shape: f32[16,1], index: 15, kind: input, shape index: {}]
  %s16 = inlined_call_operand.hbm [shape: f32[2,16,256], index: 16, kind: output, shape index: {}]
  %s17 = sld [smem:[#allocation0]]
  $region105: #{tpu_custom_call.1} parent=0
    _
  %s19 = ssub.s32 1, %s17
  %s20 = scalar_select 0, %s19, %s17
  %v21 = vstv %s13
  %22 = vst [vmem:[#allocation3] sm:$0x1] %v21
  $region1: #{tpu_custom_call.1} parent=0
    #allocation4 [shape = 'u8[16384]{0}', space=vmem, size = 0x4000, scoped, tag = 'input window, operand 4, single buffered']
    #allocation5 [shape = 's32[2]{0}', space=sflag, size = 0x8, scoped, tag = 'scoped memory for tpu_custom_call.1']
    #allocation6 [shape = 's32[2]{0}', space=sflag, size = 0x8, scoped, tag = 'scoped memory for tpu_custom_call.1']
    #allocation7 [shape = 'u8[16384]{0}', space=vmem, size = 0x4000, scoped, tag = 'input window, operand 6, single buffered']
    #allocation8 [shape = 's32[1]{0}', space=sflag, size = 0x4, scoped, tag = 'scoped memory for tpu_custom_call.1']
    #allocation9 [shape = 'u8[32768]{0}', space=vmem, size = 0x8000, scoped, tag = 'output window, operand 0']
    %23 = vsyncpa [#allocation5], 0
    %24 = vsyncpa [#allocation8], 0
    %25 = vsyncpa [#allocation6], 0
    %s26 = scalar_lea.sflag [#allocation6], 1
    %27 = vsyncpa %s26, 0
    loop: start=0, step=1, limit=4
    $region2: #{tpu_custom_call.1} parent=1 // loop_pre_header
      _
    $region3: #{tpu_custom_call.1} parent=1 // loop_header
      %s29 = sphi 0, %s33
      %p30 = scmp.ge.s32.totalorder %s29, 4
      %s39 = sphi 0, %s41
      %s42 = sphi 0, %s39
      %s43 = sphi 0, %s42
      %s59 = sphi 0, %s43
      %s63 = sphi 0, %s63
      %s65 = sphi 0, %s63
      %s66 = sphi 0, %s65
      %s80 = sphi 0, %s66
      %s84 = sphi 0, %s84
      %s86 = sphi 0, %s84
      %s87 = sphi 0, %s86
      %s101 = sphi 0, %s87
      %s105 = sphi 0, %s105
      %s107 = sphi 0, %s105
      %s108 = sphi 0, %s107
      %s122 = sphi 0, %s108
      %s126 = sphi 0, %s126
      %s128 = sphi 0, %s126
      %s129 = sphi 0, %s128
      %s143 = sphi 0, %s129
      %s147 = sphi 0, %s147
      %s149 = sphi 0, %s147
      %s150 = sphi 0, %s149
      %s164 = sphi 0, %s150
      %s168 = sphi 0, %s168
      %s170 = sphi 0, %s168
      %s171 = sphi 0, %s170
      %s185 = sphi 0, %s171
      %s189 = sphi 0, %s189
      %s191 = sphi 0, %s189
      %s192 = sphi 0, %s191
      %s206 = sphi 0, %s192
      %s210 = sphi 0, %s210
      %s212 = sphi 0, %s210
      %s213 = sphi 0, %s212
      %s227 = sphi 0, %s213
      %s231 = sphi 0, %s231
      %s233 = sphi 0, %s231
      %s234 = sphi 0, %s233
      %s248 = sphi 0, %s234
      %s252 = sphi 0, %s252
      %s254 = sphi 0, %s252
      %s255 = sphi 0, %s254
      %s269 = sphi 0, %s255
      %s273 = sphi 0, %s273
      %s275 = sphi 0, %s273
      %s276 = sphi 0, %s275
      %s290 = sphi 0, %s276
      %s294 = sphi 0, %s294
      %s296 = sphi 0, %s294
      %s297 = sphi 0, %s296
      %s311 = sphi 0, %s297
      %s315 = sphi 0, %s315
      %s317 = sphi 0, %s315
      %s318 = sphi 0, %s317
      %s332 = sphi 0, %s318
      %s336 = sphi 0, %s336
      %s338 = sphi 0, %s336
      %s339 = sphi 0, %s338
      %s353 = sphi 0, %s339
      %s357 = sphi 0, %s357
      %s359 = sphi 0, %s357
      %s360 = sphi 0, %s359
      %s374 = sphi 0, %s360
      %s380 = sphi 0, %s382
      %s383 = sphi 0, %s380
      %s384 = sphi 0, %s383
      %s400 = sphi 0, %s384
    $region4: #{tpu_custom_call.1} parent=1 // loop_header_branch
      %32 = sbr.rel (%p30) target = $region8
    $region5: #{tpu_custom_call.1} parent=1 // loop_body
      %s34 = ssub.s32 %s29, 1
      %s35 = ssub.s32 %s29, 2
      %s36 = sadd.s32 %s29, 1
      %s37 = ssub.s32 %s29, %s36
      %p38 = scmp.eq.s32.totalorder %s37, 0
      %s40 = sadd.s32 %s39, 1
      %s41 = scalar_select %p38, %s39, %s40
      %p44 = pneg %p38
      %p45 = scmp.eq.s32.totalorder %s29, 1
      %p46 = por %p44, %p45
      %p47 = scmp.ne.s32.totalorder %s39, %s42
      %p48 = scmp.eq.s32.totalorder %s29, 0
      %p49 = por %p47, %p48
      %p50 = scmp.ne.s32.totalorder %s39, %s42
      %p51 = scmp.eq.s32.totalorder %s34, 1
      %p52 = por %p50, %p51
      %p53 = scmp.ne.s32.totalorder %s42, %s43
      %p54 = scmp.eq.s32.totalorder %s34, 0
      %p55 = por %p53, %p54
      %p56 = scmp.ne.s32.totalorder %s42, %s43
      %p57 = scmp.eq.s32.totalorder %s35, 1
      %p58 = por %p56, %p57
      %p60 = scmp.ne.s32.totalorder %s43, %s59
      %p61 = scmp.eq.s32.totalorder %s35, 0
      %p62 = por %p60, %p61
      %s64 = sadd.s32 %s63, 1
      %p67 = scmp.eq.s32.totalorder %s29, 1
      %p68 = scmp.ne.s32.totalorder %s63, %s65
      %p69 = scmp.eq.s32.totalorder %s29, 0
      %p70 = por %p68, %p69
      %p71 = scmp.ne.s32.totalorder %s63, %s65
      %p72 = scmp.eq.s32.totalorder %s34, 1
      %p73 = por %p71, %p72
      %p74 = scmp.ne.s32.totalorder %s65, %s66
      %p75 = scmp.eq.s32.totalorder %s34, 0
      %p76 = por %p74, %p75
      %p77 = scmp.ne.s32.totalorder %s65, %s66
      %p78 = scmp.eq.s32.totalorder %s35, 1
      %p79 = por %p77, %p78
      %p81 = scmp.ne.s32.totalorder %s66, %s80
      %p82 = scmp.eq.s32.totalorder %s35, 0
      %p83 = por %p81, %p82
      %s85 = sadd.s32 %s84, 1
      %p88 = scmp.eq.s32.totalorder %s29, 1
      %p89 = scmp.ne.s32.totalorder %s84, %s86
      %p90 = scmp.eq.s32.totalorder %s29, 0
      %p91 = por %p89, %p90
      %p92 = scmp.ne.s32.totalorder %s84, %s86
      %p93 = scmp.eq.s32.totalorder %s34, 1
      %p94 = por %p92, %p93
      %p95 = scmp.ne.s32.totalorder %s86, %s87
      %p96 = scmp.eq.s32.totalorder %s34, 0
      %p97 = por %p95, %p96
      %p98 = scmp.ne.s32.totalorder %s86, %s87
      %p99 = scmp.eq.s32.totalorder %s35, 1
      %p100 = por %p98, %p99
      %p102 = scmp.ne.s32.totalorder %s87, %s101
      %p103 = scmp.eq.s32.totalorder %s35, 0
      %p104 = por %p102, %p103
      %s106 = sadd.s32 %s105, 1
      %p109 = scmp.eq.s32.totalorder %s29, 1
      %p110 = scmp.ne.s32.totalorder %s105, %s107
      %p111 = scmp.eq.s32.totalorder %s29, 0
      %p112 = por %p110, %p111
      %p113 = scmp.ne.s32.totalorder %s105, %s107
      %p114 = scmp.eq.s32.totalorder %s34, 1
      %p115 = por %p113, %p114
      %p116 = scmp.ne.s32.totalorder %s107, %s108
      %p117 = scmp.eq.s32.totalorder %s34, 0
      %p118 = por %p116, %p117
      %p119 = scmp.ne.s32.totalorder %s107, %s108
      %p120 = scmp.eq.s32.totalorder %s35, 1
      %p121 = por %p119, %p120
      %p123 = scmp.ne.s32.totalorder %s108, %s122
      %p124 = scmp.eq.s32.totalorder %s35, 0
      %p125 = por %p123, %p124
      %s127 = sadd.s32 %s126, 1
      %p130 = scmp.eq.s32.totalorder %s29, 1
      %p131 = scmp.ne.s32.totalorder %s126, %s128
      %p132 = scmp.eq.s32.totalorder %s29, 0
      %p133 = por %p131, %p132
      %p134 = scmp.ne.s32.totalorder %s126, %s128
      %p135 = scmp.eq.s32.totalorder %s34, 1
      %p136 = por %p134, %p135
      %p137 = scmp.ne.s32.totalorder %s128, %s129
      %p138 = scmp.eq.s32.totalorder %s34, 0
      %p139 = por %p137, %p138
      %p140 = scmp.ne.s32.totalorder %s128, %s129
      %p141 = scmp.eq.s32.totalorder %s35, 1
      %p142 = por %p140, %p141
      %p144 = scmp.ne.s32.totalorder %s129, %s143
      %p145 = scmp.eq.s32.totalorder %s35, 0
      %p146 = por %p144, %p145
      %s148 = sadd.s32 %s147, 1
      %p151 = scmp.eq.s32.totalorder %s29, 1
      %p152 = scmp.ne.s32.totalorder %s147, %s149
      %p153 = scmp.eq.s32.totalorder %s29, 0
      %p154 = por %p152, %p153
      %p155 = scmp.ne.s32.totalorder %s147, %s149
      %p156 = scmp.eq.s32.totalorder %s34, 1
      %p157 = por %p155, %p156
      %p158 = scmp.ne.s32.totalorder %s149, %s150
      %p159 = scmp.eq.s32.totalorder %s34, 0
      %p160 = por %p158, %p159
      %p161 = scmp.ne.s32.totalorder %s149, %s150
      %p162 = scmp.eq.s32.totalorder %s35, 1
      %p163 = por %p161, %p162
      %p165 = scmp.ne.s32.totalorder %s150, %s164
      %p166 = scmp.eq.s32.totalorder %s35, 0
      %p167 = por %p165, %p166
      %s169 = sadd.s32 %s168, 1
      %p172 = scmp.eq.s32.totalorder %s29, 1
      %p173 = scmp.ne.s32.totalorder %s168, %s170
      %p174 = scmp.eq.s32.totalorder %s29, 0
      %p175 = por %p173, %p174
      %p176 = scmp.ne.s32.totalorder %s168, %s170
      %p177 = scmp.eq.s32.totalorder %s34, 1
      %p178 = por %p176, %p177
      %p179 = scmp.ne.s32.totalorder %s170, %s171
      %p180 = scmp.eq.s32.totalorder %s34, 0
      %p181 = por %p179, %p180
      %p182 = scmp.ne.s32.totalorder %s170, %s171
      %p183 = scmp.eq.s32.totalorder %s35, 1
      %p184 = por %p182, %p183
      %p186 = scmp.ne.s32.totalorder %s171, %s185
      %p187 = scmp.eq.s32.totalorder %s35, 0
      %p188 = por %p186, %p187
      %s190 = sadd.s32 %s189, 1
      %p193 = scmp.eq.s32.totalorder %s29, 1
      %p194 = scmp.ne.s32.totalorder %s189, %s191
      %p195 = scmp.eq.s32.totalorder %s29, 0
      %p196 = por %p194, %p195
      %p197 = scmp.ne.s32.totalorder %s189, %s191
      %p198 = scmp.eq.s32.totalorder %s34, 1
      %p199 = por %p197, %p198
      %p200 = scmp.ne.s32.totalorder %s191, %s192
      %p201 = scmp.eq.s32.totalorder %s34, 0
      %p202 = por %p200, %p201
      %p203 = scmp.ne.s32.totalorder %s191, %s192
      %p204 = scmp.eq.s32.totalorder %s35, 1
      %p205 = por %p203, %p204
      %p207 = scmp.ne.s32.totalorder %s192, %s206
      %p208 = scmp.eq.s32.totalorder %s35, 0
      %p209 = por %p207, %p208
      %s211 = sadd.s32 %s210, 1
      %p214 = scmp.eq.s32.totalorder %s29, 1
      %p215 = scmp.ne.s32.totalorder %s210, %s212
      %p216 = scmp.eq.s32.totalorder %s29, 0
      %p217 = por %p215, %p216
      %p218 = scmp.ne.s32.totalorder %s210, %s212
      %p219 = scmp.eq.s32.totalorder %s34, 1
      %p220 = por %p218, %p219
      %p221 = scmp.ne.s32.totalorder %s212, %s213
      %p222 = scmp.eq.s32.totalorder %s34, 0
      %p223 = por %p221, %p222
      %p224 = scmp.ne.s32.totalorder %s212, %s213
      %p225 = scmp.eq.s32.totalorder %s35, 1
      %p226 = por %p224, %p225
      %p228 = scmp.ne.s32.totalorder %s213, %s227
      %p229 = scmp.eq.s32.totalorder %s35, 0
      %p230 = por %p228, %p229
      %s232 = sadd.s32 %s231, 1
      %p235 = scmp.eq.s32.totalorder %s29, 1
      %p236 = scmp.ne.s32.totalorder %s231, %s233
      %p237 = scmp.eq.s32.totalorder %s29, 0
      %p238 = por %p236, %p237
      %p239 = scmp.ne.s32.totalorder %s231, %s233
      %p240 = scmp.eq.s32.totalorder %s34, 1
      %p241 = por %p239, %p240
      %p242 = scmp.ne.s32.totalorder %s233, %s234
      %p243 = scmp.eq.s32.totalorder %s34, 0
      %p244 = por %p242, %p243
      %p245 = scmp.ne.s32.totalorder %s233, %s234
      %p246 = scmp.eq.s32.totalorder %s35, 1
      %p247 = por %p245, %p246
      %p249 = scmp.ne.s32.totalorder %s234, %s248
      %p250 = scmp.eq.s32.totalorder %s35, 0
      %p251 = por %p249, %p250
      %s253 = sadd.s32 %s252, 1
      %p256 = scmp.eq.s32.totalorder %s29, 1
      %p257 = scmp.ne.s32.totalorder %s252, %s254
      %p258 = scmp.eq.s32.totalorder %s29, 0
      %p259 = por %p257, %p258
      %p260 = scmp.ne.s32.totalorder %s252, %s254
      %p261 = scmp.eq.s32.totalorder %s34, 1
      %p262 = por %p260, %p261
      %p263 = scmp.ne.s32.totalorder %s254, %s255
      %p264 = scmp.eq.s32.totalorder %s34, 0
      %p265 = por %p263, %p264
      %p266 = scmp.ne.s32.totalorder %s254, %s255
      %p267 = scmp.eq.s32.totalorder %s35, 1
      %p268 = por %p266, %p267
      %p270 = scmp.ne.s32.totalorder %s255, %s269
      %p271 = scmp.eq.s32.totalorder %s35, 0
      %p272 = por %p270, %p271
      %s274 = sadd.s32 %s273, 1
      %p277 = scmp.eq.s32.totalorder %s29, 1
      %p278 = scmp.ne.s32.totalorder %s273, %s275
      %p279 = scmp.eq.s32.totalorder %s29, 0
      %p280 = por %p278, %p279
      %p281 = scmp.ne.s32.totalorder %s273, %s275
      %p282 = scmp.eq.s32.totalorder %s34, 1
      %p283 = por %p281, %p282
      %p284 = scmp.ne.s32.totalorder %s275, %s276
      %p285 = scmp.eq.s32.totalorder %s34, 0
      %p286 = por %p284, %p285
      %p287 = scmp.ne.s32.totalorder %s275, %s276
      %p288 = scmp.eq.s32.totalorder %s35, 1
      %p289 = por %p287, %p288
      %p291 = scmp.ne.s32.totalorder %s276, %s290
      %p292 = scmp.eq.s32.totalorder %s35, 0
      %p293 = por %p291, %p292
      %s295 = sadd.s32 %s294, 1
      %p298 = scmp.eq.s32.totalorder %s29, 1
      %p299 = scmp.ne.s32.totalorder %s294, %s296
      %p300 = scmp.eq.s32.totalorder %s29, 0
      %p301 = por %p299, %p300
      %p302 = scmp.ne.s32.totalorder %s294, %s296
      %p303 = scmp.eq.s32.totalorder %s34, 1
      %p304 = por %p302, %p303
      %p305 = scmp.ne.s32.totalorder %s296, %s297
      %p306 = scmp.eq.s32.totalorder %s34, 0
      %p307 = por %p305, %p306
      %p308 = scmp.ne.s32.totalorder %s296, %s297
      %p309 = scmp.eq.s32.totalorder %s35, 1
      %p310 = por %p308, %p309
      %p312 = scmp.ne.s32.totalorder %s297, %s311
      %p313 = scmp.eq.s32.totalorder %s35, 0
      %p314 = por %p312, %p313
      %s316 = sadd.s32 %s315, 1
      %p319 = scmp.eq.s32.totalorder %s29, 1
      %p320 = scmp.ne.s32.totalorder %s315, %s317
      %p321 = scmp.eq.s32.totalorder %s29, 0
      %p322 = por %p320, %p321
      %p323 = scmp.ne.s32.totalorder %s315, %s317
      %p324 = scmp.eq.s32.totalorder %s34, 1
      %p325 = por %p323, %p324
      %p326 = scmp.ne.s32.totalorder %s317, %s318
      %p327 = scmp.eq.s32.totalorder %s34, 0
      %p328 = por %p326, %p327
      %p329 = scmp.ne.s32.totalorder %s317, %s318
      %p330 = scmp.eq.s32.totalorder %s35, 1
      %p331 = por %p329, %p330
      %p333 = scmp.ne.s32.totalorder %s318, %s332
      %p334 = scmp.eq.s32.totalorder %s35, 0
      %p335 = por %p333, %p334
      %s337 = sadd.s32 %s336, 1
      %p340 = scmp.eq.s32.totalorder %s29, 1
      %p341 = scmp.ne.s32.totalorder %s336, %s338
      %p342 = scmp.eq.s32.totalorder %s29, 0
      %p343 = por %p341, %p342
      %p344 = scmp.ne.s32.totalorder %s336, %s338
      %p345 = scmp.eq.s32.totalorder %s34, 1
      %p346 = por %p344, %p345
      %p347 = scmp.ne.s32.totalorder %s338, %s339
      %p348 = scmp.eq.s32.totalorder %s34, 0
      %p349 = por %p347, %p348
      %p350 = scmp.ne.s32.totalorder %s338, %s339
      %p351 = scmp.eq.s32.totalorder %s35, 1
      %p352 = por %p350, %p351
      %p354 = scmp.ne.s32.totalorder %s339, %s353
      %p355 = scmp.eq.s32.totalorder %s35, 0
      %p356 = por %p354, %p355
      %s358 = sadd.s32 %s357, 1
      %p361 = scmp.eq.s32.totalorder %s29, 1
      %p362 = scmp.ne.s32.totalorder %s357, %s359
      %p363 = scmp.eq.s32.totalorder %s29, 0
      %p364 = por %p362, %p363
      %p365 = scmp.ne.s32.totalorder %s357, %s359
      %p366 = scmp.eq.s32.totalorder %s34, 1
      %p367 = por %p365, %p366
      %p368 = scmp.ne.s32.totalorder %s359, %s360
      %p369 = scmp.eq.s32.totalorder %s34, 0
      %p370 = por %p368, %p369
      %p371 = scmp.ne.s32.totalorder %s359, %s360
      %p372 = scmp.eq.s32.totalorder %s35, 1
      %p373 = por %p371, %p372
      %p375 = scmp.ne.s32.totalorder %s360, %s374
      %p376 = scmp.eq.s32.totalorder %s35, 0
      %p377 = por %p375, %p376
      %s378 = ssub.s32 %s29, %s36
      %p379 = scmp.eq.s32.totalorder %s378, 0
      %s381 = sadd.s32 %s380, 1
      %s382 = scalar_select %p379, %s380, %s381
      %p385 = pneg %p379
      %p386 = scmp.eq.s32.totalorder %s29, 1
      %p387 = por %p385, %p386
      %p388 = scmp.ne.s32.totalorder %s380, %s383
      %p389 = scmp.eq.s32.totalorder %s29, 0
      %p390 = por %p388, %p389
      %p391 = scmp.ne.s32.totalorder %s380, %s383
      %p392 = scmp.eq.s32.totalorder %s34, 1
      %p393 = por %p391, %p392
      %p394 = scmp.ne.s32.totalorder %s383, %s384
      %p395 = scmp.eq.s32.totalorder %s34, 0
      %p396 = por %p394, %p395
      %p397 = scmp.ne.s32.totalorder %s383, %s384
      %p398 = scmp.eq.s32.totalorder %s35, 1
      %p399 = por %p397, %p398
      %p401 = scmp.ne.s32.totalorder %s384, %s400
      %p402 = scmp.eq.s32.totalorder %s35, 0
      %p403 = por %p401, %p402
      %p404 = scmp.le.s32.totalorder 1, %s29
      %p405 = scmp.lt.s32.totalorder %s29, 3
      %p406 = pnand %p404, %p405
      %p407 = pneg %p406
      // Predicated region
      $region9: #{tpu_custom_call.1} parent=5 // pred_check
        _
      $region10: #{tpu_custom_call.1} parent=5 // pred_check_branch
        %409 = sbr.rel (%p406) target = $region12
      $region11: #{tpu_custom_call.1} parent=5 // pred_region
        %s410 = ssub.s32 %s29, 1
        // Predicated region
        $region13: #{tpu_custom_call.1} parent=11 // pred_check
          %p411 = pneg %p76
        $region14: #{tpu_custom_call.1} parent=11 // pred_check_branch
          %413 = sbr.rel (%p411) target = $region16
        $region15: #{tpu_custom_call.1} parent=11 // pred_region
          _
        $region16: #{tpu_custom_call.1} parent=11 // pred_fallthru
          _
        // Predicated region
        $region17: #{tpu_custom_call.1} parent=11 // pred_check
          %p414 = pneg %p97
        $region18: #{tpu_custom_call.1} parent=11 // pred_check_branch
          %416 = sbr.rel (%p414) target = $region20
        $region19: #{tpu_custom_call.1} parent=11 // pred_region
          _
        $region20: #{tpu_custom_call.1} parent=11 // pred_fallthru
          _
        // Predicated region
        $region21: #{tpu_custom_call.1} parent=11 // pred_check
          %p417 = pneg %p118
        $region22: #{tpu_custom_call.1} parent=11 // pred_check_branch
          %419 = sbr.rel (%p417) target = $region24
        $region23: #{tpu_custom_call.1} parent=11 // pred_region
          _
        $region24: #{tpu_custom_call.1} parent=11 // pred_fallthru
          _
        // Predicated region
        $region25: #{tpu_custom_call.1} parent=11 // pred_check
          %p420 = pneg %p139
        $region26: #{tpu_custom_call.1} parent=11 // pred_check_branch
          %422 = sbr.rel (%p420) target = $region28
        $region27: #{tpu_custom_call.1} parent=11 // pred_region
          %s424 = ssub.s32 512, 512
          %425 = vsyncadd [#allocation5], %s424
          %s426 = sshll.u32 [#allocation4], 4
          %s427 = int_to_ptr.vmem [resolvable:$true] %s426
          %432 = dma.hbm_to_vmem [thread:$0]  %s4, 512, %s427, [#allocation5], 256, 256, 16
        $region28: #{tpu_custom_call.1} parent=11 // pred_fallthru
          _
        // Predicated region
        $region29: #{tpu_custom_call.1} parent=11 // pred_check
          %p433 = pneg %p160
        $region30: #{tpu_custom_call.1} parent=11 // pred_check_branch
          %435 = sbr.rel (%p433) target = $region32
        $region31: #{tpu_custom_call.1} parent=11 // pred_region
          _
        $region32: #{tpu_custom_call.1} parent=11 // pred_fallthru
          _
        // Predicated region
        $region33: #{tpu_custom_call.1} parent=11 // pred_check
          %p436 = pneg %p181
        $region34: #{tpu_custom_call.1} parent=11 // pred_check_branch
          %438 = sbr.rel (%p436) target = $region36
        $region35: #{tpu_custom_call.1} parent=11 // pred_region
          %s440 = ssub.s32 512, 512
          %441 = vsyncadd [#allocation8], %s440
          %s442 = sshll.u32 [#allocation7], 4
          %s443 = int_to_ptr.vmem [resolvable:$true] %s442
          %448 = dma.hbm_to_vmem [thread:$0]  %s6, 512, %s443, [#allocation8], 256, 256, 16
        $region36: #{tpu_custom_call.1} parent=11 // pred_fallthru
          _
        // Predicated region
        $region37: #{tpu_custom_call.1} parent=11 // pred_check
          %p449 = pneg %p202
        $region38: #{tpu_custom_call.1} parent=11 // pred_check_branch
          %451 = sbr.rel (%p449) target = $region40
        $region39: #{tpu_custom_call.1} parent=11 // pred_region
          _
        $region40: #{tpu_custom_call.1} parent=11 // pred_fallthru
          _
        // Predicated region
        $region41: #{tpu_custom_call.1} parent=11 // pred_check
          %p452 = pneg %p223
        $region42: #{tpu_custom_call.1} parent=11 // pred_check_branch
          %454 = sbr.rel (%p452) target = $region44
        $region43: #{tpu_custom_call.1} parent=11 // pred_region
          _
        $region44: #{tpu_custom_call.1} parent=11 // pred_fallthru
          _
        // Predicated region
        $region45: #{tpu_custom_call.1} parent=11 // pred_check
          %p455 = pneg %p244
        $region46: #{tpu_custom_call.1} parent=11 // pred_check_branch
          %457 = sbr.rel (%p455) target = $region48
        $region47: #{tpu_custom_call.1} parent=11 // pred_region
          _
        $region48: #{tpu_custom_call.1} parent=11 // pred_fallthru
          _
        // Predicated region
        $region49: #{tpu_custom_call.1} parent=11 // pred_check
          %p458 = pneg %p265
        $region50: #{tpu_custom_call.1} parent=11 // pred_check_branch
          %460 = sbr.rel (%p458) target = $region52
        $region51: #{tpu_custom_call.1} parent=11 // pred_region
          _
        $region52: #{tpu_custom_call.1} parent=11 // pred_fallthru
          _
        // Predicated region
        $region53: #{tpu_custom_call.1} parent=11 // pred_check
          %p461 = pneg %p286
        $region54: #{tpu_custom_call.1} parent=11 // pred_check_branch
          %463 = sbr.rel (%p461) target = $region56
        $region55: #{tpu_custom_call.1} parent=11 // pred_region
          _
        $region56: #{tpu_custom_call.1} parent=11 // pred_fallthru
          _
        // Predicated region
        $region57: #{tpu_custom_call.1} parent=11 // pred_check
          %p464 = pneg %p307
        $region58: #{tpu_custom_call.1} parent=11 // pred_check_branch
          %466 = sbr.rel (%p464) target = $region60
        $region59: #{tpu_custom_call.1} parent=11 // pred_region
          _
        $region60: #{tpu_custom_call.1} parent=11 // pred_fallthru
          _
        // Predicated region
        $region61: #{tpu_custom_call.1} parent=11 // pred_check
          %p467 = pneg %p328
        $region62: #{tpu_custom_call.1} parent=11 // pred_check_branch
          %469 = sbr.rel (%p467) target = $region64
        $region63: #{tpu_custom_call.1} parent=11 // pred_region
          _
        $region64: #{tpu_custom_call.1} parent=11 // pred_fallthru
          _
        // Predicated region
        $region65: #{tpu_custom_call.1} parent=11 // pred_check
          %p470 = pneg %p349
        $region66: #{tpu_custom_call.1} parent=11 // pred_check_branch
          %472 = sbr.rel (%p470) target = $region68
        $region67: #{tpu_custom_call.1} parent=11 // pred_region
          _
        $region68: #{tpu_custom_call.1} parent=11 // pred_fallthru
          _
        // Predicated region
        $region69: #{tpu_custom_call.1} parent=11 // pred_check
          %p473 = pneg %p370
        $region70: #{tpu_custom_call.1} parent=11 // pred_check_branch
          %475 = sbr.rel (%p473) target = $region72
        $region71: #{tpu_custom_call.1} parent=11 // pred_region
          _
        $region72: #{tpu_custom_call.1} parent=11 // pred_fallthru
          _
      $region12: #{tpu_custom_call.1} parent=5 // pred_fallthru
        _
      %p476 = scmp.lt.s32.totalorder %s29, 2
      // Predicated region
      $region73: #{tpu_custom_call.1} parent=5 // pred_check
        %p477 = pneg %p476
      $region74: #{tpu_custom_call.1} parent=5 // pred_check_branch
        %479 = sbr.rel (%p477) target = $region76
      $region75: #{tpu_custom_call.1} parent=5 // pred_region
        // Predicated region
        $region77: #{tpu_custom_call.1} parent=75 // pred_check
          %p480 = pneg %p49
        $region78: #{tpu_custom_call.1} parent=75 // pred_check_branch
          %482 = sbr.rel (%p480) target = $region80
        $region79: #{tpu_custom_call.1} parent=75 // pred_region
          %p483 = scmp.lt.s32.totalorder %s29, 1
          %s484 = scalar_select %p483, %s29, 1
          %s485 = smul.addr %s484, 4
          %s486 = smul.addr %s485, 8
          %s487 = scalar_lea.vmem %s0, %s486
        $region80: #{tpu_custom_call.1} parent=75 // pred_fallthru
          _
      $region76: #{tpu_custom_call.1} parent=5 // pred_fallthru
        _
      %p488 = scmp.le.s32.totalorder 1, %s29
      %p489 = scmp.lt.s32.totalorder %s29, 3
      %p490 = pnand %p488, %p489
      %p491 = pneg %p490
      // Predicated region
      $region81: #{tpu_custom_call.1} parent=5 // pred_check
        _
      $region82: #{tpu_custom_call.1} parent=5 // pred_check_branch
        %493 = sbr.rel (%p490) target = $region84
      $region83: #{tpu_custom_call.1} parent=5 // pred_region
        %s494 = ssub.s32 %s29, 1
        // Predicated region
        $region85: #{tpu_custom_call.1} parent=83 // pred_check
          %p495 = pneg %p139
        $region86: #{tpu_custom_call.1} parent=83 // pred_check_branch
          %497 = sbr.rel (%p495) target = $region88
        $region87: #{tpu_custom_call.1} parent=83 // pred_region
          %498 = dma.done [#allocation5], 512
        $region88: #{tpu_custom_call.1} parent=83 // pred_fallthru
          _
        // Predicated region
        $region89: #{tpu_custom_call.1} parent=83 // pred_check
          %p499 = pneg %p181
        $region90: #{tpu_custom_call.1} parent=83 // pred_check_branch
          %501 = sbr.rel (%p499) target = $region92
        $region91: #{tpu_custom_call.1} parent=83 // pred_region
          %502 = dma.done [#allocation8], 512
        $region92: #{tpu_custom_call.1} parent=83 // pred_fallthru
          _
        %p503 = scmp.lt.s32.totalorder %s34, 1
        %s504 = scalar_select %p503, %s34, 1
        %s505 = smul.addr %s504, 4
        %s506 = smul.addr %s505, 8
        %s507 = scalar_lea.vmem %s0, %s506
        %p508 = pneg %p55
        %p509 = pneg %p52
        %p510 = pneg %p76
        %p511 = pneg %p73
        %p512 = pneg %p97
        %p513 = pneg %p94
        %p514 = pneg %p118
        %p515 = pneg %p115
        %p516 = pneg %p139
        %p517 = pneg %p136
        %p518 = pneg %p160
        %p519 = pneg %p157
        %p520 = pneg %p181
        %p521 = pneg %p178
        %p522 = pneg %p202
        %p523 = pneg %p199
        %p524 = pneg %p223
        %p525 = pneg %p220
        %p526 = pneg %p244
        %p527 = pneg %p241
        %p528 = pneg %p265
        %p529 = pneg %p262
        %p530 = pneg %p286
        %p531 = pneg %p283
        %p532 = pneg %p307
        %p533 = pneg %p304
        %p534 = pneg %p328
        %p535 = pneg %p325
        %p536 = pneg %p349
        %p537 = pneg %p346
        %p538 = pneg %p370
        %p539 = pneg %p367
        %p540 = pneg %p396
        %p541 = pneg %p393
        %s542 = sand.u32 %s383, 1
        %s543 = scalar_lea.sflag [#allocation6], %s542
        %s544 = sand.u32 %s383, 1
        %s545 = smul.addr %s544, 32
        %s546 = scalar_lea.vmem [#allocation9], %s545
        %p547 = scmp.lt.s32.totalorder %s34, 1
        %s548 = scalar_select %p547, %s34, 1
        %s549 = smul.addr %s548, 4
        %s550 = smul.addr %s549, 8
        %s551 = scalar_lea.vmem %s0, %s550
        %v552 = vld [vmem:[%s551] sm:$0xff]
        %v553 = vld [vmem:[%s551 + $0x8] sm:$0xff]
        %v554 = vld [vmem:[%s551 + $0x10] sm:$0xff]
        %v555 = vld [vmem:[%s551 + $0x18] sm:$0xff]
        %558 = vrot.lane.b32.xlu0 %v553, 17
        %v559 = vpop.permute.xlu0 %558
        %560 = vrot.lane.b32.xlu0 %v555, 17
        %v561 = vpop.permute.xlu0 %560
        %566 = vrot.lane.b32.xlu0 %v552, 17
        %v567 = vpop.permute.xlu0 %566
        %568 = vrot.lane.b32.xlu0 %v554, 17
        %v569 = vpop.permute.xlu0 %568
        %vm570 = vcmask 138240
        %v571 = vsel %vm570, %v567, %v559
        %v572 = vsel %vm570, %v569, %v561
        %v577 = vsel %vm570, %v559, %v567
        %v578 = vsel %vm570, %v561, %v569
        %v579 = vld [vmem:[%s1] ss:$8 sm:$0x3]
        %v581 = vlaneseq
        %v582 = vshrl.u32 %v581, 7
        %v583 = vsub.s32 0, %v582
        %v584 = vrot.slane %v579, %v583
        %v585 = vlaneseq
        %v586 = vshrl.u32 %v585, 7
        %v587 = vsub.s32 1, %v586
        %v588 = vrot.slane %v579, %v587
        %v591 = vmul.f32 %v577, %v584
        %v592 = vmul.f32 %v571, %v588
        %v593 = vmul.f32 %v578, %v584
        %v594 = vmul.f32 %v572, %v588
        %595 = vrot.lane.b32.xlu0 %v553, 16
        %v596 = vpop.permute.xlu0 %595
        %597 = vrot.lane.b32.xlu0 %v555, 16
        %v598 = vpop.permute.xlu0 %597
        %601 = vrot.lane.b32.xlu0 %v552, 16
        %v602 = vpop.permute.xlu0 %601
        %603 = vrot.lane.b32.xlu0 %v554, 16
        %v604 = vpop.permute.xlu0 %603
        %vm605 = vcmask 130048
        %v606 = vsel %vm605, %v602, %v596
        %v607 = vsel %vm605, %v604, %v598
        %v612 = vsel %vm605, %v596, %v602
        %v613 = vsel %vm605, %v598, %v604
        %s614 = scalar_lea.vmem %s1, 1
        %v615 = vld [vmem:[%s614] ss:$8 sm:$0x3]
        %v617 = vlaneseq
        %v618 = vshrl.u32 %v617, 7
        %v619 = vsub.s32 0, %v618
        %v620 = vrot.slane %v615, %v619
        %v621 = vlaneseq
        %v622 = vshrl.u32 %v621, 7
        %v623 = vsub.s32 1, %v622
        %v624 = vrot.slane %v615, %v623
        %v627 = vmul.f32 %v612, %v620
        %v628 = vmul.f32 %v606, %v624
        %v629 = vmul.f32 %v613, %v620
        %v630 = vmul.f32 %v607, %v624
        %631 = vrot.lane.b32.xlu0 %v553, 15
        %v632 = vpop.permute.xlu0 %631
        %633 = vrot.lane.b32.xlu0 %v555, 15
        %v634 = vpop.permute.xlu0 %633
        %637 = vrot.lane.b32.xlu0 %v552, 15
        %v638 = vpop.permute.xlu0 %637
        %639 = vrot.lane.b32.xlu0 %v554, 15
        %v640 = vpop.permute.xlu0 %639
        %vm641 = vcmask 121856
        %v642 = vsel %vm641, %v638, %v632
        %v643 = vsel %vm641, %v640, %v634
        %v648 = vsel %vm641, %v632, %v638
        %v649 = vsel %vm641, %v634, %v640
        %s650 = scalar_lea.vmem %s1, 2
        %v651 = vld [vmem:[%s650] ss:$8 sm:$0x3]
        %v653 = vlaneseq
        %v654 = vshrl.u32 %v653, 7
        %v655 = vsub.s32 0, %v654
        %v656 = vrot.slane %v651, %v655
        %v657 = vlaneseq
        %v658 = vshrl.u32 %v657, 7
        %v659 = vsub.s32 1, %v658
        %v660 = vrot.slane %v651, %v659
        %v663 = vmul.f32 %v648, %v656
        %v664 = vmul.f32 %v642, %v660
        %v665 = vmul.f32 %v649, %v656
        %v666 = vmul.f32 %v643, %v660
        %667 = vrot.lane.b32.xlu0 %v553, 1
        %v668 = vpop.permute.xlu0 %667
        %669 = vrot.lane.b32.xlu0 %v555, 1
        %v670 = vpop.permute.xlu0 %669
        %673 = vrot.lane.b32.xlu0 %v552, 1
        %v674 = vpop.permute.xlu0 %673
        %675 = vrot.lane.b32.xlu0 %v554, 1
        %v676 = vpop.permute.xlu0 %675
        %vm677 = vcmask 7168
        %v678 = vsel %vm677, %v674, %v668
        %v679 = vsel %vm677, %v676, %v670
        %v684 = vsel %vm677, %v668, %v674
        %v685 = vsel %vm677, %v670, %v676
        %s686 = scalar_lea.vmem %s1, 3
        %v687 = vld [vmem:[%s686] ss:$8 sm:$0x3]
        %v689 = vlaneseq
        %v690 = vshrl.u32 %v689, 7
        %v691 = vsub.s32 0, %v690
        %v692 = vrot.slane %v687, %v691
        %v693 = vlaneseq
        %v694 = vshrl.u32 %v693, 7
        %v695 = vsub.s32 1, %v694
        %v696 = vrot.slane %v687, %v695
        %v699 = vmul.f32 %v684, %v692
        %v700 = vmul.f32 %v678, %v696
        %v701 = vmul.f32 %v685, %v692
        %v702 = vmul.f32 %v679, %v696
        %703 = vrot.lane.b32.xlu0 %v552, 127
        %v704 = vpop.permute.xlu0 %703
        %705 = vrot.lane.b32.xlu0 %v553, 127
        %v706 = vpop.permute.xlu0 %705
        %707 = vrot.lane.b32.xlu0 %v554, 127
        %v708 = vpop.permute.xlu0 %707
        %709 = vrot.lane.b32.xlu0 %v555, 127
        %v710 = vpop.permute.xlu0 %709
        %vm711 = vcmask 1039360
        %v712 = vsel %vm711, %v704, %v706
        %v713 = vsel %vm711, %v708, %v710
        %v720 = vsel %vm711, %v706, %v704
        %v721 = vsel %vm711, %v710, %v708
        %s722 = scalar_lea.vmem %s1, 5
        %v723 = vld [vmem:[%s722] ss:$8 sm:$0x3]
        %v725 = vlaneseq
        %v726 = vshrl.u32 %v725, 7
        %v727 = vsub.s32 0, %v726
        %v728 = vrot.slane %v723, %v727
        %v729 = vlaneseq
        %v730 = vshrl.u32 %v729, 7
        %v731 = vsub.s32 1, %v730
        %v732 = vrot.slane %v723, %v731
        %v735 = vmul.f32 %v712, %v728
        %v736 = vmul.f32 %v720, %v732
        %v737 = vmul.f32 %v713, %v728
        %v738 = vmul.f32 %v721, %v732
        %739 = vrot.lane.b32.xlu0 %v552, 113
        %v740 = vpop.permute.xlu0 %739
        %741 = vrot.lane.b32.xlu0 %v553, 113
        %v742 = vpop.permute.xlu0 %741
        %743 = vrot.lane.b32.xlu0 %v554, 113
        %v744 = vpop.permute.xlu0 %743
        %745 = vrot.lane.b32.xlu0 %v555, 113
        %v746 = vpop.permute.xlu0 %745
        %vm747 = vcmask 924672
        %v748 = vsel %vm747, %v740, %v742
        %v749 = vsel %vm747, %v744, %v746
        %v756 = vsel %vm747, %v742, %v740
        %v757 = vsel %vm747, %v746, %v744
        %s758 = scalar_lea.vmem %s1, 6
        %v759 = vld [vmem:[%s758] ss:$8 sm:$0x3]
        %v761 = vlaneseq
        %v762 = vshrl.u32 %v761, 7
        %v763 = vsub.s32 0, %v762
        %v764 = vrot.slane %v759, %v763
        %v765 = vlaneseq
        %v766 = vshrl.u32 %v765, 7
        %v767 = vsub.s32 1, %v766
        %v768 = vrot.slane %v759, %v767
        %v771 = vmul.f32 %v748, %v764
        %v772 = vmul.f32 %v756, %v768
        %v773 = vmul.f32 %v749, %v764
        %v774 = vmul.f32 %v757, %v768
        %775 = vrot.lane.b32.xlu0 %v552, 112
        %v776 = vpop.permute.xlu0 %775
        %777 = vrot.lane.b32.xlu0 %v553, 112
        %v778 = vpop.permute.xlu0 %777
        %779 = vrot.lane.b32.xlu0 %v554, 112
        %v780 = vpop.permute.xlu0 %779
        %781 = vrot.lane.b32.xlu0 %v555, 112
        %v782 = vpop.permute.xlu0 %781
        %vm783 = vcmask 916480
        %v784 = vsel %vm783, %v776, %v778
        %v785 = vsel %vm783, %v780, %v782
        %v792 = vsel %vm783, %v778, %v776
        %v793 = vsel %vm783, %v782, %v780
        %s794 = scalar_lea.vmem %s1, 7
        %v795 = vld [vmem:[%s794] ss:$8 sm:$0x3]
        %v797 = vlaneseq
        %v798 = vshrl.u32 %v797, 7
        %v799 = vsub.s32 0, %v798
        %v800 = vrot.slane %v795, %v799
        %v801 = vlaneseq
        %v802 = vshrl.u32 %v801, 7
        %v803 = vsub.s32 1, %v802
        %v804 = vrot.slane %v795, %v803
        %v807 = vmul.f32 %v784, %v800
        %v808 = vmul.f32 %v792, %v804
        %v809 = vmul.f32 %v785, %v800
        %v810 = vmul.f32 %v793, %v804
        %811 = vrot.lane.b32.xlu0 %v552, 111
        %v812 = vpop.permute.xlu0 %811
        %813 = vrot.lane.b32.xlu0 %v553, 111
        %v814 = vpop.permute.xlu0 %813
        %815 = vrot.lane.b32.xlu0 %v554, 111
        %v816 = vpop.permute.xlu0 %815
        %817 = vrot.lane.b32.xlu0 %v555, 111
        %v818 = vpop.permute.xlu0 %817
        %vm819 = vcmask 908288
        %v820 = vsel %vm819, %v812, %v814
        %v821 = vsel %vm819, %v816, %v818
        %v828 = vsel %vm819, %v814, %v812
        %v829 = vsel %vm819, %v818, %v816
        %s830 = scalar_lea.vmem %s1, 16
        %v831 = vld [vmem:[%s830] ss:$8 sm:$0x3]
        %v833 = vlaneseq
        %v834 = vshrl.u32 %v833, 7
        %v835 = vsub.s32 0, %v834
        %v836 = vrot.slane %v831, %v835
        %v837 = vlaneseq
        %v838 = vshrl.u32 %v837, 7
        %v839 = vsub.s32 1, %v838
        %v840 = vrot.slane %v831, %v839
        %v843 = vmul.f32 %v820, %v836
        %v844 = vmul.f32 %v828, %v840
        %v845 = vmul.f32 %v821, %v836
        %v846 = vmul.f32 %v829, %v840
        %v847 = vld [vmem:[%s2] sm:$0xff]
        %v848 = vld [vmem:[%s2 + $0x8] sm:$0xff]
        %v849 = vld [vmem:[%s2 + $0x10] sm:$0xff]
        %v850 = vld [vmem:[%s2 + $0x18] sm:$0xff]
        %v851 = vld [vmem:[%s3] sm:$0xff]
        %v852 = vld [vmem:[%s3 + $0x8] sm:$0xff]
        %854 = vset.pattern.permute.xlu0 0
        %855 = vperm.xlu0 %854, %v851
        %v856 = vpop.permute.xlu0 %855
        %859 = vset.pattern.permute.xlu0 0
        %860 = vperm.xlu0 %859, %v852
        %v861 = vpop.permute.xlu0 %860
        %v864 = vsel %vm605, %v848, 0
        %v867 = vsel %vm605, %v850, 0
        %869 = vmatprep.subr.mxu0 %v592
        %870 = vmatpush1.msra.mxu0 %v591
        %871 = vmatprep.subr.mxu0 %v594
        %872 = vmatpush1.msra.mxu0 %v593
        %873 = vmatprep.subr.mxu0 %v628
        %874 = vmatpush1.msra.mxu0 %v627
        %875 = vmatprep.subr.mxu0 %v630
        %876 = vmatpush1.msra.mxu0 %v629
        %877 = vmatprep.subr.mxu0 %v664
        %878 = vmatpush1.msra.mxu0 %v663
        %879 = vmatprep.subr.mxu0 %v666
        %880 = vmatpush1.msra.mxu0 %v665
        %881 = vmatprep.subr.mxu0 %v700
        %882 = vmatpush1.msra.mxu0 %v699
        %883 = vmatprep.subr.mxu0 %v702
        %884 = vmatpush1.msra.mxu0 %v701
        %885 = vmatprep.subr.mxu0 %v553
        %886 = vmatpush1.msra.mxu0 %v552
        %887 = vmatprep.subr.mxu0 %v555
        %888 = vmatpush1.msra.mxu0 %v554
        %889 = vmatprep.subr.mxu0 %v736
        %890 = vmatpush1.msra.mxu0 %v735
        %891 = vmatprep.subr.mxu0 %v738
        %892 = vmatpush1.msra.mxu0 %v737
        %893 = vmatprep.subr.mxu0 %v772
        %894 = vmatpush1.msra.mxu0 %v771
        %895 = vmatprep.subr.mxu0 %v774
        %896 = vmatpush1.msra.mxu0 %v773
        %897 = vmatprep.subr.mxu0 %v808
        %898 = vmatpush1.msra.mxu0 %v807
        %899 = vmatprep.subr.mxu0 %v810
        %900 = vmatpush1.msra.mxu0 %v809
        %901 = vmatprep.subr.mxu0 %v844
        %902 = vmatpush1.msra.mxu0 %v843
        %903 = vmatprep.subr.mxu0 %v846
        %904 = vmatpush1.msra.mxu0 %v845
        %905 = vmatprep.subr.mxu0 0.0
        %906 = vmatpush1.msra.mxu0 0.0
        %907 = vmatprep.subr.mxu0 0.0
        %908 = vmatpush1.msra.mxu0 0.0
        %909 = vmatprep.subr.mxu0 0.0
        %910 = vmatpush1.msra.mxu0 0.0
        %911 = vmatprep.subr.mxu0 0.0
        %912 = vmatpush1.msra.mxu0 0.0
        %913 = vmatprep.subr.mxu0 0.0
        %914 = vmatpush1.msra.mxu0 0.0
        %915 = vmatprep.subr.mxu0 0.0
        %916 = vmatpush1.msra.mxu0 0.0
        %917 = vmatprep.subr.mxu0 0.0
        %918 = vmatpush1.msra.mxu0 0.0
        %919 = vmatprep.subr.mxu0 0.0
        %920 = vmatpush1.msra.mxu0 0.0
        %921 = vmatprep.subr.mxu0 0.0
        %922 = vmatpush1.msra.mxu0 0.0
        %923 = vmatprep.subr.mxu0 0.0
        %924 = vmatpush1.msra.mxu0 0.0
        %925 = vmatprep.subr.mxu0 0.0
        %926 = vmatpush1.msra.mxu0 0.0
        %927 = vmatprep.subr.mxu0 0.0
        %928 = vmatpush1.msra.mxu0 0.0
        %929 = vmatprep.subr.mxu0 0.0
        %930 = vmatpush1.msra.mxu0 0.0
        %931 = vmatprep.subr.mxu0 0.0
        %932 = vmatpush1.msra.mxu0 0.0
        %933 = vmatprep.mubr.f32.mxu0 %v864
        %934 = vmatmul.mubr.f32.gmra.mrb[0].mxu0 %v847
        %v935 = vpop.f32.mrb[0].mxu0
        %v936 = vadd.f32 %v856, %v935
        %v937 = vpop.f32.mrb[0].mxu0
        %v938 = vadd.f32 %v856, %v937
        %939 = vmatprep.mubr.f32.mxu0 %v867
        %940 = vmatmul.mubr.f32.gmra.mrb[0].mxu0 %v849
        %v941 = vpop.f32.mrb[0].mxu0
        %v942 = vadd.f32 %v861, %v941
        %v943 = vpop.f32.mrb[0].mxu0
        %v944 = vadd.f32 %v861, %v943
        %945 = vdwg.mxu0
        %vm946 = vcmp.ge.f32.partialorder %v936, 0.0
        %vm947 = vcmp.ge.f32.partialorder %v938, 0.0
        %vm948 = vcmp.ge.f32.partialorder %v942, 0.0
        %vm949 = vcmp.ge.f32.partialorder %v944, 0.0
        %v950 = vmul.f32 %v936, 0.05
        %v951 = vmul.f32 %v938, 0.05
        %v952 = vmul.f32 %v942, 0.05
        %v953 = vmul.f32 %v944, 0.05
        %v954 = vsel %vm946, %v936, %v950
        %v955 = vsel %vm947, %v938, %v951
        %v956 = vsel %vm948, %v942, %v952
        %v957 = vsel %vm949, %v944, %v953
        %958 = vst [vmem:[#allocation2] sm:$0xf] %v954
        %959 = vst [vmem:[#allocation2 + $0x8] sm:$0xf] %v955
        %962 = vrot.lane.b32.xlu0 %v955, 17
        %v963 = vpop.permute.xlu0 %962
        %964 = vrot.lane.b32.xlu0 %v957, 17
        %v965 = vpop.permute.xlu0 %964
        %970 = vrot.lane.b32.xlu0 %v954, 17
        %v971 = vpop.permute.xlu0 %970
        %972 = vrot.lane.b32.xlu0 %v956, 17
        %v973 = vpop.permute.xlu0 %972
        %v974 = vsel %vm570, %v971, %v963
        %v975 = vsel %vm570, %v973, %v965
        %v980 = vsel %vm570, %v963, %v971
        %v981 = vsel %vm570, %v965, %v973
        %v982 = vld [vmem:[%s1] ss:$8 sm:$0x3]
        %v984 = vlaneseq
        %v985 = vshrl.u32 %v984, 7
        %v986 = vsub.s32 0, %v985
        %v987 = vrot.slane %v982, %v986
        %v988 = vlaneseq
        %v989 = vshrl.u32 %v988, 7
        %v990 = vsub.s32 1, %v989
        %v991 = vrot.slane %v982, %v990
        %v994 = vmul.f32 %v980, %v987
        %v995 = vmul.f32 %v974, %v991
        %v996 = vmul.f32 %v981, %v987
        %v997 = vmul.f32 %v975, %v991
        %998 = vrot.lane.b32.xlu0 %v955, 16
        %v999 = vpop.permute.xlu0 %998
        %1000 = vrot.lane.b32.xlu0 %v957, 16
        %v1001 = vpop.permute.xlu0 %1000
        %1004 = vrot.lane.b32.xlu0 %v954, 16
        %v1005 = vpop.permute.xlu0 %1004
        %1006 = vrot.lane.b32.xlu0 %v956, 16
        %v1007 = vpop.permute.xlu0 %1006
        %v1008 = vsel %vm605, %v1005, %v999
        %v1009 = vsel %vm605, %v1007, %v1001
        %v1014 = vsel %vm605, %v999, %v1005
        %v1015 = vsel %vm605, %v1001, %v1007
        %v1016 = vld [vmem:[%s614] ss:$8 sm:$0x3]
        %v1018 = vlaneseq
        %v1019 = vshrl.u32 %v1018, 7
        %v1020 = vsub.s32 0, %v1019
        %v1021 = vrot.slane %v1016, %v1020
        %v1022 = vlaneseq
        %v1023 = vshrl.u32 %v1022, 7
        %v1024 = vsub.s32 1, %v1023
        %v1025 = vrot.slane %v1016, %v1024
        %v1028 = vmul.f32 %v1014, %v1021
        %v1029 = vmul.f32 %v1008, %v1025
        %v1030 = vmul.f32 %v1015, %v1021
        %v1031 = vmul.f32 %v1009, %v1025
        %1032 = vrot.lane.b32.xlu0 %v955, 15
        %v1033 = vpop.permute.xlu0 %1032
        %1034 = vrot.lane.b32.xlu0 %v957, 15
        %v1035 = vpop.permute.xlu0 %1034
        %1038 = vrot.lane.b32.xlu0 %v954, 15
        %v1039 = vpop.permute.xlu0 %1038
        %1040 = vrot.lane.b32.xlu0 %v956, 15
        %v1041 = vpop.permute.xlu0 %1040
        %v1042 = vsel %vm641, %v1039, %v1033
        %v1043 = vsel %vm641, %v1041, %v1035
        %v1048 = vsel %vm641, %v1033, %v1039
        %v1049 = vsel %vm641, %v1035, %v1041
        %v1050 = vld [vmem:[%s650] ss:$8 sm:$0x3]
        %v1052 = vlaneseq
        %v1053 = vshrl.u32 %v1052, 7
        %v1054 = vsub.s32 0, %v1053
        %v1055 = vrot.slane %v1050, %v1054
        %v1056 = vlaneseq
        %v1057 = vshrl.u32 %v1056, 7
        %v1058 = vsub.s32 1, %v1057
        %v1059 = vrot.slane %v1050, %v1058
        %v1062 = vmul.f32 %v1048, %v1055
        %v1063 = vmul.f32 %v1042, %v1059
        %v1064 = vmul.f32 %v1049, %v1055
        %v1065 = vmul.f32 %v1043, %v1059
        %1066 = vrot.lane.b32.xlu0 %v955, 1
        %v1067 = vpop.permute.xlu0 %1066
        %1068 = vrot.lane.b32.xlu0 %v957, 1
        %v1069 = vpop.permute.xlu0 %1068
        %1072 = vrot.lane.b32.xlu0 %v954, 1
        %v1073 = vpop.permute.xlu0 %1072
        %1074 = vrot.lane.b32.xlu0 %v956, 1
        %v1075 = vpop.permute.xlu0 %1074
        %v1076 = vsel %vm677, %v1073, %v1067
        %v1077 = vsel %vm677, %v1075, %v1069
        %v1082 = vsel %vm677, %v1067, %v1073
        %v1083 = vsel %vm677, %v1069, %v1075
        %v1084 = vld [vmem:[%s686] ss:$8 sm:$0x3]
        %v1086 = vlaneseq
        %v1087 = vshrl.u32 %v1086, 7
        %v1088 = vsub.s32 0, %v1087
        %v1089 = vrot.slane %v1084, %v1088
        %v1090 = vlaneseq
        %v1091 = vshrl.u32 %v1090, 7
        %v1092 = vsub.s32 1, %v1091
        %v1093 = vrot.slane %v1084, %v1092
        %v1096 = vmul.f32 %v1082, %v1089
        %v1097 = vmul.f32 %v1076, %v1093
        %v1098 = vmul.f32 %v1083, %v1089
        %v1099 = vmul.f32 %v1077, %v1093
        %1100 = vrot.lane.b32.xlu0 %v954, 127
        %v1101 = vpop.permute.xlu0 %1100
        %1102 = vrot.lane.b32.xlu0 %v955, 127
        %v1103 = vpop.permute.xlu0 %1102
        %1104 = vrot.lane.b32.xlu0 %v956, 127
        %v1105 = vpop.permute.xlu0 %1104
        %1106 = vrot.lane.b32.xlu0 %v957, 127
        %v1107 = vpop.permute.xlu0 %1106
        %v1108 = vsel %vm711, %v1101, %v1103
        %v1109 = vsel %vm711, %v1105, %v1107
        %v1116 = vsel %vm711, %v1103, %v1101
        %v1117 = vsel %vm711, %v1107, %v1105
        %v1118 = vld [vmem:[%s722] ss:$8 sm:$0x3]
        %v1120 = vlaneseq
        %v1121 = vshrl.u32 %v1120, 7
        %v1122 = vsub.s32 0, %v1121
        %v1123 = vrot.slane %v1118, %v1122
        %v1124 = vlaneseq
        %v1125 = vshrl.u32 %v1124, 7
        %v1126 = vsub.s32 1, %v1125
        %v1127 = vrot.slane %v1118, %v1126
        %v1130 = vmul.f32 %v1108, %v1123
        %v1131 = vmul.f32 %v1116, %v1127
        %v1132 = vmul.f32 %v1109, %v1123
        %v1133 = vmul.f32 %v1117, %v1127
        %1134 = vrot.lane.b32.xlu0 %v954, 113
        %v1135 = vpop.permute.xlu0 %1134
        %1136 = vrot.lane.b32.xlu0 %v955, 113
        %v1137 = vpop.permute.xlu0 %1136
        %1138 = vrot.lane.b32.xlu0 %v956, 113
        %v1139 = vpop.permute.xlu0 %1138
        %1140 = vrot.lane.b32.xlu0 %v957, 113
        %v1141 = vpop.permute.xlu0 %1140
        %v1142 = vsel %vm747, %v1135, %v1137
        %v1143 = vsel %vm747, %v1139, %v1141
        %v1150 = vsel %vm747, %v1137, %v1135
        %v1151 = vsel %vm747, %v1141, %v1139
        %v1152 = vld [vmem:[%s758] ss:$8 sm:$0x3]
        %v1154 = vlaneseq
        %v1155 = vshrl.u32 %v1154, 7
        %v1156 = vsub.s32 0, %v1155
        %v1157 = vrot.slane %v1152, %v1156
        %v1158 = vlaneseq
        %v1159 = vshrl.u32 %v1158, 7
        %v1160 = vsub.s32 1, %v1159
        %v1161 = vrot.slane %v1152, %v1160
        %v1164 = vmul.f32 %v1142, %v1157
        %v1165 = vmul.f32 %v1150, %v1161
        %v1166 = vmul.f32 %v1143, %v1157
        %v1167 = vmul.f32 %v1151, %v1161
        %1168 = vrot.lane.b32.xlu0 %v954, 112
        %v1169 = vpop.permute.xlu0 %1168
        %1170 = vrot.lane.b32.xlu0 %v955, 112
        %v1171 = vpop.permute.xlu0 %1170
        %1172 = vrot.lane.b32.xlu0 %v956, 112
        %v1173 = vpop.permute.xlu0 %1172
        %1174 = vrot.lane.b32.xlu0 %v957, 112
        %v1175 = vpop.permute.xlu0 %1174
        %v1176 = vsel %vm783, %v1169, %v1171
        %v1177 = vsel %vm783, %v1173, %v1175
        %v1184 = vsel %vm783, %v1171, %v1169
        %v1185 = vsel %vm783, %v1175, %v1173
        %v1186 = vld [vmem:[%s794] ss:$8 sm:$0x3]
        %v1188 = vlaneseq
        %v1189 = vshrl.u32 %v1188, 7
        %v1190 = vsub.s32 0, %v1189
        %v1191 = vrot.slane %v1186, %v1190
        %v1192 = vlaneseq
        %v1193 = vshrl.u32 %v1192, 7
        %v1194 = vsub.s32 1, %v1193
        %v1195 = vrot.slane %v1186, %v1194
        %v1198 = vmul.f32 %v1176, %v1191
        %v1199 = vmul.f32 %v1184, %v1195
        %v1200 = vmul.f32 %v1177, %v1191
        %v1201 = vmul.f32 %v1185, %v1195
        %1202 = vrot.lane.b32.xlu0 %v954, 111
        %v1203 = vpop.permute.xlu0 %1202
        %1204 = vrot.lane.b32.xlu0 %v955, 111
        %v1205 = vpop.permute.xlu0 %1204
        %1206 = vrot.lane.b32.xlu0 %v956, 111
        %v1207 = vpop.permute.xlu0 %1206
        %1208 = vrot.lane.b32.xlu0 %v957, 111
        %v1209 = vpop.permute.xlu0 %1208
        %v1210 = vsel %vm819, %v1203, %v1205
        %v1211 = vsel %vm819, %v1207, %v1209
        %v1218 = vsel %vm819, %v1205, %v1203
        %v1219 = vsel %vm819, %v1209, %v1207
        %v1220 = vld [vmem:[%s830] ss:$8 sm:$0x3]
        %v1222 = vlaneseq
        %v1223 = vshrl.u32 %v1222, 7
        %v1224 = vsub.s32 0, %v1223
        %v1225 = vrot.slane %v1220, %v1224
        %v1226 = vlaneseq
        %v1227 = vshrl.u32 %v1226, 7
        %v1228 = vsub.s32 1, %v1227
        %v1229 = vrot.slane %v1220, %v1228
        %v1232 = vmul.f32 %v1210, %v1225
        %v1233 = vmul.f32 %v1218, %v1229
        %v1234 = vmul.f32 %v1211, %v1225
        %v1235 = vmul.f32 %v1219, %v1229
        %v1236 = vld [vmem:[#allocation4] sm:$0xff]
        %v1237 = vld [vmem:[#allocation4 + $0x8] sm:$0xff]
        %v1238 = vld [vmem:[#allocation4 + $0x10] sm:$0xff]
        %v1239 = vld [vmem:[#allocation4 + $0x18] sm:$0xff]
        %v1240 = vld [vmem:[%s5] sm:$0xff]
        %v1241 = vld [vmem:[%s5 + $0x8] sm:$0xff]
        %1243 = vset.pattern.permute.xlu0 0
        %1244 = vperm.xlu0 %1243, %v1240
        %v1245 = vpop.permute.xlu0 %1244
        %1248 = vset.pattern.permute.xlu0 0
        %1249 = vperm.xlu0 %1248, %v1241
        %v1250 = vpop.permute.xlu0 %1249
        %v1253 = vsel %vm605, %v1237, 0
        %v1256 = vsel %vm605, %v1239, 0
        %1258 = vmatprep.subr.mxu0 %v995
        %1259 = vmatpush1.msra.mxu0 %v994
        %1260 = vmatprep.subr.mxu0 %v997
        %1261 = vmatpush1.msra.mxu0 %v996
        %1262 = vmatprep.subr.mxu0 %v1029
        %1263 = vmatpush1.msra.mxu0 %v1028
        %1264 = vmatprep.subr.mxu0 %v1031
        %1265 = vmatpush1.msra.mxu0 %v1030
        %1266 = vmatprep.subr.mxu0 %v1063
        %1267 = vmatpush1.msra.mxu0 %v1062
        %1268 = vmatprep.subr.mxu0 %v1065
        %1269 = vmatpush1.msra.mxu0 %v1064
        %1270 = vmatprep.subr.mxu0 %v1097
        %1271 = vmatpush1.msra.mxu0 %v1096
        %1272 = vmatprep.subr.mxu0 %v1099
        %1273 = vmatpush1.msra.mxu0 %v1098
        %1274 = vmatprep.subr.mxu0 %v955
        %1275 = vmatpush1.msra.mxu0 %v954
        %1276 = vmatprep.subr.mxu0 %v957
        %1277 = vmatpush1.msra.mxu0 %v956
        %1278 = vmatprep.subr.mxu0 %v1131
        %1279 = vmatpush1.msra.mxu0 %v1130
        %1280 = vmatprep.subr.mxu0 %v1133
        %1281 = vmatpush1.msra.mxu0 %v1132
        %1282 = vmatprep.subr.mxu0 %v1165
        %1283 = vmatpush1.msra.mxu0 %v1164
        %1284 = vmatprep.subr.mxu0 %v1167
        %1285 = vmatpush1.msra.mxu0 %v1166
        %1286 = vmatprep.subr.mxu0 %v1199
        %1287 = vmatpush1.msra.mxu0 %v1198
        %1288 = vmatprep.subr.mxu0 %v1201
        %1289 = vmatpush1.msra.mxu0 %v1200
        %1290 = vmatprep.subr.mxu0 %v1233
        %1291 = vmatpush1.msra.mxu0 %v1232
        %1292 = vmatprep.subr.mxu0 %v1235
        %1293 = vmatpush1.msra.mxu0 %v1234
        %1294 = vmatprep.subr.mxu0 0.0
        %1295 = vmatpush1.msra.mxu0 0.0
        %1296 = vmatprep.subr.mxu0 0.0
        %1297 = vmatpush1.msra.mxu0 0.0
        %1298 = vmatprep.subr.mxu0 0.0
        %1299 = vmatpush1.msra.mxu0 0.0
        %1300 = vmatprep.subr.mxu0 0.0
        %1301 = vmatpush1.msra.mxu0 0.0
        %1302 = vmatprep.subr.mxu0 0.0
        %1303 = vmatpush1.msra.mxu0 0.0
        %1304 = vmatprep.subr.mxu0 0.0
        %1305 = vmatpush1.msra.mxu0 0.0
        %1306 = vmatprep.subr.mxu0 0.0
        %1307 = vmatpush1.msra.mxu0 0.0
        %1308 = vmatprep.subr.mxu0 0.0
        %1309 = vmatpush1.msra.mxu0 0.0
        %1310 = vmatprep.subr.mxu0 0.0
        %1311 = vmatpush1.msra.mxu0 0.0
        %1312 = vmatprep.subr.mxu0 0.0
        %1313 = vmatpush1.msra.mxu0 0.0
        %1314 = vmatprep.subr.mxu0 0.0
        %1315 = vmatpush1.msra.mxu0 0.0
        %1316 = vmatprep.subr.mxu0 0.0
        %1317 = vmatpush1.msra.mxu0 0.0
        %1318 = vmatprep.subr.mxu0 0.0
        %1319 = vmatpush1.msra.mxu0 0.0
        %1320 = vmatprep.subr.mxu0 0.0
        %1321 = vmatpush1.msra.mxu0 0.0
        %1322 = vmatprep.mubr.f32.mxu0 %v1253
        %1323 = vmatmul.mubr.f32.gmra.mrb[0].mxu0 %v1236
        %v1324 = vpop.f32.mrb[0].mxu0
        %v1325 = vadd.f32 %v1245, %v1324
        %v1326 = vpop.f32.mrb[0].mxu0
        %v1327 = vadd.f32 %v1245, %v1326
        %1328 = vmatprep.mubr.f32.mxu0 %v1256
        %1329 = vmatmul.mubr.f32.gmra.mrb[0].mxu0 %v1238
        %v1330 = vpop.f32.mrb[0].mxu0
        %v1331 = vadd.f32 %v1250, %v1330
        %v1332 = vpop.f32.mrb[0].mxu0
        %v1333 = vadd.f32 %v1250, %v1332
        %1334 = vdwg.mxu0
        %vm1335 = vcmp.ge.f32.partialorder %v1325, 0.0
        %vm1336 = vcmp.ge.f32.partialorder %v1327, 0.0
        %vm1337 = vcmp.ge.f32.partialorder %v1331, 0.0
        %vm1338 = vcmp.ge.f32.partialorder %v1333, 0.0
        %v1339 = vmul.f32 %v1325, 0.05
        %v1340 = vmul.f32 %v1327, 0.05
        %v1341 = vmul.f32 %v1331, 0.05
        %v1342 = vmul.f32 %v1333, 0.05
        %v1343 = vsel %vm1335, %v1325, %v1339
        %v1344 = vsel %vm1336, %v1327, %v1340
        %v1345 = vsel %vm1337, %v1331, %v1341
        %v1346 = vsel %vm1338, %v1333, %v1342
        %v1349 = vrot.slane %v1343, 4
        %v1350 = vrot.slane %v1344, 4
        %1353 = vst [vmem:[#allocation2] sm:$0xf0] %v1349
        %1354 = vst [vmem:[#allocation2 + $0x8] sm:$0xf0] %v1350
        %1356 = vrot.lane.b32.xlu0 %v1344, 17
        %v1357 = vpop.permute.xlu0 %1356
        %1358 = vrot.lane.b32.xlu0 %v1346, 17
        %v1359 = vpop.permute.xlu0 %1358
        %1363 = vrot.lane.b32.xlu0 %v1343, 17
        %v1364 = vpop.permute.xlu0 %1363
        %1365 = vrot.lane.b32.xlu0 %v1345, 17
        %v1366 = vpop.permute.xlu0 %1365
        %v1367 = vsel %vm570, %v1364, %v1357
        %v1368 = vsel %vm570, %v1366, %v1359
        %v1373 = vsel %vm570, %v1357, %v1364
        %v1374 = vsel %vm570, %v1359, %v1366
        %v1375 = vld [vmem:[%s1] ss:$8 sm:$0x3]
        %v1377 = vlaneseq
        %v1378 = vshrl.u32 %v1377, 7
        %v1379 = vsub.s32 0, %v1378
        %v1380 = vrot.slane %v1375, %v1379
        %v1381 = vlaneseq
        %v1382 = vshrl.u32 %v1381, 7
        %v1383 = vsub.s32 1, %v1382
        %v1384 = vrot.slane %v1375, %v1383
        %v1387 = vmul.f32 %v1373, %v1380
        %v1388 = vmul.f32 %v1367, %v1384
        %v1389 = vmul.f32 %v1374, %v1380
        %v1390 = vmul.f32 %v1368, %v1384
        %1391 = vrot.lane.b32.xlu0 %v1344, 16
        %v1392 = vpop.permute.xlu0 %1391
        %1393 = vrot.lane.b32.xlu0 %v1346, 16
        %v1394 = vpop.permute.xlu0 %1393
        %1397 = vrot.lane.b32.xlu0 %v1343, 16
        %v1398 = vpop.permute.xlu0 %1397
        %1399 = vrot.lane.b32.xlu0 %v1345, 16
        %v1400 = vpop.permute.xlu0 %1399
        %v1401 = vsel %vm605, %v1398, %v1392
        %v1402 = vsel %vm605, %v1400, %v1394
        %v1407 = vsel %vm605, %v1392, %v1398
        %v1408 = vsel %vm605, %v1394, %v1400
        %v1409 = vld [vmem:[%s614] ss:$8 sm:$0x3]
        %v1411 = vlaneseq
        %v1412 = vshrl.u32 %v1411, 7
        %v1413 = vsub.s32 0, %v1412
        %v1414 = vrot.slane %v1409, %v1413
        %v1415 = vlaneseq
        %v1416 = vshrl.u32 %v1415, 7
        %v1417 = vsub.s32 1, %v1416
        %v1418 = vrot.slane %v1409, %v1417
        %v1421 = vmul.f32 %v1407, %v1414
        %v1422 = vmul.f32 %v1401, %v1418
        %v1423 = vmul.f32 %v1408, %v1414
        %v1424 = vmul.f32 %v1402, %v1418
        %1425 = vrot.lane.b32.xlu0 %v1344, 15
        %v1426 = vpop.permute.xlu0 %1425
        %1427 = vrot.lane.b32.xlu0 %v1346, 15
        %v1428 = vpop.permute.xlu0 %1427
        %1431 = vrot.lane.b32.xlu0 %v1343, 15
        %v1432 = vpop.permute.xlu0 %1431
        %1433 = vrot.lane.b32.xlu0 %v1345, 15
        %v1434 = vpop.permute.xlu0 %1433
        %v1435 = vsel %vm641, %v1432, %v1426
        %v1436 = vsel %vm641, %v1434, %v1428
        %v1441 = vsel %vm641, %v1426, %v1432
        %v1442 = vsel %vm641, %v1428, %v1434
        %v1443 = vld [vmem:[%s650] ss:$8 sm:$0x3]
        %v1445 = vlaneseq
        %v1446 = vshrl.u32 %v1445, 7
        %v1447 = vsub.s32 0, %v1446
        %v1448 = vrot.slane %v1443, %v1447
        %v1449 = vlaneseq
        %v1450 = vshrl.u32 %v1449, 7
        %v1451 = vsub.s32 1, %v1450
        %v1452 = vrot.slane %v1443, %v1451
        %v1455 = vmul.f32 %v1441, %v1448
        %v1456 = vmul.f32 %v1435, %v1452
        %v1457 = vmul.f32 %v1442, %v1448
        %v1458 = vmul.f32 %v1436, %v1452
        %1459 = vrot.lane.b32.xlu0 %v1344, 1
        %v1460 = vpop.permute.xlu0 %1459
        %1461 = vrot.lane.b32.xlu0 %v1346, 1
        %v1462 = vpop.permute.xlu0 %1461
        %1465 = vrot.lane.b32.xlu0 %v1343, 1
        %v1466 = vpop.permute.xlu0 %1465
        %1467 = vrot.lane.b32.xlu0 %v1345, 1
        %v1468 = vpop.permute.xlu0 %1467
        %v1469 = vsel %vm677, %v1466, %v1460
        %v1470 = vsel %vm677, %v1468, %v1462
        %v1475 = vsel %vm677, %v1460, %v1466
        %v1476 = vsel %vm677, %v1462, %v1468
        %v1477 = vld [vmem:[%s686] ss:$8 sm:$0x3]
        %v1479 = vlaneseq
        %v1480 = vshrl.u32 %v1479, 7
        %v1481 = vsub.s32 0, %v1480
        %v1482 = vrot.slane %v1477, %v1481
        %v1483 = vlaneseq
        %v1484 = vshrl.u32 %v1483, 7
        %v1485 = vsub.s32 1, %v1484
        %v1486 = vrot.slane %v1477, %v1485
        %v1489 = vmul.f32 %v1475, %v1482
        %v1490 = vmul.f32 %v1469, %v1486
        %v1491 = vmul.f32 %v1476, %v1482
        %v1492 = vmul.f32 %v1470, %v1486
        %1493 = vrot.lane.b32.xlu0 %v1343, 127
        %v1494 = vpop.permute.xlu0 %1493
        %1495 = vrot.lane.b32.xlu0 %v1344, 127
        %v1496 = vpop.permute.xlu0 %1495
        %1497 = vrot.lane.b32.xlu0 %v1345, 127
        %v1498 = vpop.permute.xlu0 %1497
        %1499 = vrot.lane.b32.xlu0 %v1346, 127
        %v1500 = vpop.permute.xlu0 %1499
        %v1501 = vsel %vm711, %v1494, %v1496
        %v1502 = vsel %vm711, %v1498, %v1500
        %v1509 = vsel %vm711, %v1496, %v1494
        %v1510 = vsel %vm711, %v1500, %v1498
        %v1511 = vld [vmem:[%s722] ss:$8 sm:$0x3]
        %v1513 = vlaneseq
        %v1514 = vshrl.u32 %v1513, 7
        %v1515 = vsub.s32 0, %v1514
        %v1516 = vrot.slane %v1511, %v1515
        %v1517 = vlaneseq
        %v1518 = vshrl.u32 %v1517, 7
        %v1519 = vsub.s32 1, %v1518
        %v1520 = vrot.slane %v1511, %v1519
        %v1523 = vmul.f32 %v1501, %v1516
        %v1524 = vmul.f32 %v1509, %v1520
        %v1525 = vmul.f32 %v1502, %v1516
        %v1526 = vmul.f32 %v1510, %v1520
        %1527 = vrot.lane.b32.xlu0 %v1343, 113
        %v1528 = vpop.permute.xlu0 %1527
        %1529 = vrot.lane.b32.xlu0 %v1344, 113
        %v1530 = vpop.permute.xlu0 %1529
        %1531 = vrot.lane.b32.xlu0 %v1345, 113
        %v1532 = vpop.permute.xlu0 %1531
        %1533 = vrot.lane.b32.xlu0 %v1346, 113
        %v1534 = vpop.permute.xlu0 %1533
        %v1535 = vsel %vm747, %v1528, %v1530
        %v1536 = vsel %vm747, %v1532, %v1534
        %v1543 = vsel %vm747, %v1530, %v1528
        %v1544 = vsel %vm747, %v1534, %v1532
        %v1545 = vld [vmem:[%s758] ss:$8 sm:$0x3]
        %v1547 = vlaneseq
        %v1548 = vshrl.u32 %v1547, 7
        %v1549 = vsub.s32 0, %v1548
        %v1550 = vrot.slane %v1545, %v1549
        %v1551 = vlaneseq
        %v1552 = vshrl.u32 %v1551, 7
        %v1553 = vsub.s32 1, %v1552
        %v1554 = vrot.slane %v1545, %v1553
        %v1557 = vmul.f32 %v1535, %v1550
        %v1558 = vmul.f32 %v1543, %v1554
        %v1559 = vmul.f32 %v1536, %v1550
        %v1560 = vmul.f32 %v1544, %v1554
        %1561 = vrot.lane.b32.xlu0 %v1343, 112
        %v1562 = vpop.permute.xlu0 %1561
        %1563 = vrot.lane.b32.xlu0 %v1344, 112
        %v1564 = vpop.permute.xlu0 %1563
        %1565 = vrot.lane.b32.xlu0 %v1345, 112
        %v1566 = vpop.permute.xlu0 %1565
        %1567 = vrot.lane.b32.xlu0 %v1346, 112
        %v1568 = vpop.permute.xlu0 %1567
        %v1569 = vsel %vm783, %v1562, %v1564
        %v1570 = vsel %vm783, %v1566, %v1568
        %v1577 = vsel %vm783, %v1564, %v1562
        %v1578 = vsel %vm783, %v1568, %v1566
        %v1579 = vld [vmem:[%s794] ss:$8 sm:$0x3]
        %v1581 = vlaneseq
        %v1582 = vshrl.u32 %v1581, 7
        %v1583 = vsub.s32 0, %v1582
        %v1584 = vrot.slane %v1579, %v1583
        %v1585 = vlaneseq
        %v1586 = vshrl.u32 %v1585, 7
        %v1587 = vsub.s32 1, %v1586
        %v1588 = vrot.slane %v1579, %v1587
        %v1591 = vmul.f32 %v1569, %v1584
        %v1592 = vmul.f32 %v1577, %v1588
        %v1593 = vmul.f32 %v1570, %v1584
        %v1594 = vmul.f32 %v1578, %v1588
        %1595 = vrot.lane.b32.xlu0 %v1343, 111
        %v1596 = vpop.permute.xlu0 %1595
        %1597 = vrot.lane.b32.xlu0 %v1344, 111
        %v1598 = vpop.permute.xlu0 %1597
        %1599 = vrot.lane.b32.xlu0 %v1345, 111
        %v1600 = vpop.permute.xlu0 %1599
        %1601 = vrot.lane.b32.xlu0 %v1346, 111
        %v1602 = vpop.permute.xlu0 %1601
        %v1603 = vsel %vm819, %v1596, %v1598
        %v1604 = vsel %vm819, %v1600, %v1602
        %v1611 = vsel %vm819, %v1598, %v1596
        %v1612 = vsel %vm819, %v1602, %v1600
        %v1613 = vld [vmem:[%s830] ss:$8 sm:$0x3]
        %v1615 = vlaneseq
        %v1616 = vshrl.u32 %v1615, 7
        %v1617 = vsub.s32 0, %v1616
        %v1618 = vrot.slane %v1613, %v1617
        %v1619 = vlaneseq
        %v1620 = vshrl.u32 %v1619, 7
        %v1621 = vsub.s32 1, %v1620
        %v1622 = vrot.slane %v1613, %v1621
        %v1625 = vmul.f32 %v1603, %v1618
        %v1626 = vmul.f32 %v1611, %v1622
        %v1627 = vmul.f32 %v1604, %v1618
        %v1628 = vmul.f32 %v1612, %v1622
        %v1629 = vld [vmem:[#allocation7] sm:$0xff]
        %v1630 = vld [vmem:[#allocation7 + $0x8] sm:$0xff]
        %v1631 = vld [vmem:[#allocation7 + $0x10] sm:$0xff]
        %v1632 = vld [vmem:[#allocation7 + $0x18] sm:$0xff]
        %v1633 = vld [vmem:[%s7] sm:$0xff]
        %v1634 = vld [vmem:[%s7 + $0x8] sm:$0xff]
        %1636 = vset.pattern.permute.xlu0 0
        %1637 = vperm.xlu0 %1636, %v1633
        %v1638 = vpop.permute.xlu0 %1637
        %1641 = vset.pattern.permute.xlu0 0
        %1642 = vperm.xlu0 %1641, %v1634
        %v1643 = vpop.permute.xlu0 %1642
        %v1646 = vsel %vm605, %v1630, 0
        %v1649 = vsel %vm605, %v1632, 0
        %1651 = vmatprep.subr.mxu0 %v1388
        %1652 = vmatpush1.msra.mxu0 %v1387
        %1653 = vmatprep.subr.mxu0 %v1390
        %1654 = vmatpush1.msra.mxu0 %v1389
        %1655 = vmatprep.subr.mxu0 %v1422
        %1656 = vmatpush1.msra.mxu0 %v1421
        %1657 = vmatprep.subr.mxu0 %v1424
        %1658 = vmatpush1.msra.mxu0 %v1423
        %1659 = vmatprep.subr.mxu0 %v1456
        %1660 = vmatpush1.msra.mxu0 %v1455
        %1661 = vmatprep.subr.mxu0 %v1458
        %1662 = vmatpush1.msra.mxu0 %v1457
        %1663 = vmatprep.subr.mxu0 %v1490
        %1664 = vmatpush1.msra.mxu0 %v1489
        %1665 = vmatprep.subr.mxu0 %v1492
        %1666 = vmatpush1.msra.mxu0 %v1491
        %1667 = vmatprep.subr.mxu0 %v1344
        %1668 = vmatpush1.msra.mxu0 %v1343
        %1669 = vmatprep.subr.mxu0 %v1346
        %1670 = vmatpush1.msra.mxu0 %v1345
        %1671 = vmatprep.subr.mxu0 %v1524
        %1672 = vmatpush1.msra.mxu0 %v1523
        %1673 = vmatprep.subr.mxu0 %v1526
        %1674 = vmatpush1.msra.mxu0 %v1525
        %1675 = vmatprep.subr.mxu0 %v1558
        %1676 = vmatpush1.msra.mxu0 %v1557
        %1677 = vmatprep.subr.mxu0 %v1560
        %1678 = vmatpush1.msra.mxu0 %v1559
        %1679 = vmatprep.subr.mxu0 %v1592
        %1680 = vmatpush1.msra.mxu0 %v1591
        %1681 = vmatprep.subr.mxu0 %v1594
        %1682 = vmatpush1.msra.mxu0 %v1593
        %1683 = vmatprep.subr.mxu0 %v1626
        %1684 = vmatpush1.msra.mxu0 %v1625
        %1685 = vmatprep.subr.mxu0 %v1628
        %1686 = vmatpush1.msra.mxu0 %v1627
        %1687 = vmatprep.subr.mxu0 0.0
        %1688 = vmatpush1.msra.mxu0 0.0
        %1689 = vmatprep.subr.mxu0 0.0
        %1690 = vmatpush1.msra.mxu0 0.0
        %1691 = vmatprep.subr.mxu0 0.0
        %1692 = vmatpush1.msra.mxu0 0.0
        %1693 = vmatprep.subr.mxu0 0.0
        %1694 = vmatpush1.msra.mxu0 0.0
        %1695 = vmatprep.subr.mxu0 0.0
        %1696 = vmatpush1.msra.mxu0 0.0
        %1697 = vmatprep.subr.mxu0 0.0
        %1698 = vmatpush1.msra.mxu0 0.0
        %1699 = vmatprep.subr.mxu0 0.0
        %1700 = vmatpush1.msra.mxu0 0.0
        %1701 = vmatprep.subr.mxu0 0.0
        %1702 = vmatpush1.msra.mxu0 0.0
        %1703 = vmatprep.subr.mxu0 0.0
        %1704 = vmatpush1.msra.mxu0 0.0
        %1705 = vmatprep.subr.mxu0 0.0
        %1706 = vmatpush1.msra.mxu0 0.0
        %1707 = vmatprep.subr.mxu0 0.0
        %1708 = vmatpush1.msra.mxu0 0.0
        %1709 = vmatprep.subr.mxu0 0.0
        %1710 = vmatpush1.msra.mxu0 0.0
        %1711 = vmatprep.subr.mxu0 0.0
        %1712 = vmatpush1.msra.mxu0 0.0
        %1713 = vmatprep.subr.mxu0 0.0
        %1714 = vmatpush1.msra.mxu0 0.0
        %1715 = vmatprep.mubr.f32.mxu0 %v1646
        %1716 = vmatmul.mubr.f32.gmra.mrb[0].mxu0 %v1629
        %v1717 = vpop.f32.mrb[0].mxu0
        %v1718 = vadd.f32 %v1638, %v1717
        %v1719 = vpop.f32.mrb[0].mxu0
        %v1720 = vadd.f32 %v1638, %v1719
        %1721 = vmatprep.mubr.f32.mxu0 %v1649
        %1722 = vmatmul.mubr.f32.gmra.mrb[0].mxu0 %v1631
        %v1723 = vpop.f32.mrb[0].mxu0
        %v1724 = vadd.f32 %v1643, %v1723
        %v1725 = vpop.f32.mrb[0].mxu0
        %v1726 = vadd.f32 %v1643, %v1725
        %1727 = vdwg.mxu0
        %vm1728 = vcmp.ge.f32.partialorder %v1718, 0.0
        %vm1729 = vcmp.ge.f32.partialorder %v1720, 0.0
        %vm1730 = vcmp.ge.f32.partialorder %v1724, 0.0
        %vm1731 = vcmp.ge.f32.partialorder %v1726, 0.0
        %v1732 = vmul.f32 %v1718, 0.05
        %v1733 = vmul.f32 %v1720, 0.05
        %v1734 = vmul.f32 %v1724, 0.05
        %v1735 = vmul.f32 %v1726, 0.05
        %v1736 = vsel %vm1728, %v1718, %v1732
        %v1737 = vsel %vm1729, %v1720, %v1733
        %v1738 = vsel %vm1730, %v1724, %v1734
        %v1739 = vsel %vm1731, %v1726, %v1735
        %1740 = vst [vmem:[#allocation2 + $0x10] sm:$0xf] %v1736
        %1741 = vst [vmem:[#allocation2 + $0x18] sm:$0xf] %v1737
        %1744 = vrot.lane.b32.xlu0 %v1737, 17
        %v1745 = vpop.permute.xlu0 %1744
        %1746 = vrot.lane.b32.xlu0 %v1739, 17
        %v1747 = vpop.permute.xlu0 %1746
        %1752 = vrot.lane.b32.xlu0 %v1736, 17
        %v1753 = vpop.permute.xlu0 %1752
        %1754 = vrot.lane.b32.xlu0 %v1738, 17
        %v1755 = vpop.permute.xlu0 %1754
        %v1756 = vsel %vm570, %v1753, %v1745
        %v1757 = vsel %vm570, %v1755, %v1747
        %v1762 = vsel %vm570, %v1745, %v1753
        %v1763 = vsel %vm570, %v1747, %v1755
        %v1764 = vld [vmem:[%s1] ss:$8 sm:$0x3]
        %v1766 = vlaneseq
        %v1767 = vshrl.u32 %v1766, 7
        %v1768 = vsub.s32 0, %v1767
        %v1769 = vrot.slane %v1764, %v1768
        %v1770 = vlaneseq
        %v1771 = vshrl.u32 %v1770, 7
        %v1772 = vsub.s32 1, %v1771
        %v1773 = vrot.slane %v1764, %v1772
        %v1776 = vmul.f32 %v1762, %v1769
        %v1777 = vmul.f32 %v1756, %v1773
        %v1778 = vmul.f32 %v1763, %v1769
        %v1779 = vmul.f32 %v1757, %v1773
        %1780 = vrot.lane.b32.xlu0 %v1737, 16
        %v1781 = vpop.permute.xlu0 %1780
        %1782 = vrot.lane.b32.xlu0 %v1739, 16
        %v1783 = vpop.permute.xlu0 %1782
        %1786 = vrot.lane.b32.xlu0 %v1736, 16
        %v1787 = vpop.permute.xlu0 %1786
        %1788 = vrot.lane.b32.xlu0 %v1738, 16
        %v1789 = vpop.permute.xlu0 %1788
        %v1790 = vsel %vm605, %v1787, %v1781
        %v1791 = vsel %vm605, %v1789, %v1783
        %v1796 = vsel %vm605, %v1781, %v1787
        %v1797 = vsel %vm605, %v1783, %v1789
        %v1798 = vld [vmem:[%s614] ss:$8 sm:$0x3]
        %v1800 = vlaneseq
        %v1801 = vshrl.u32 %v1800, 7
        %v1802 = vsub.s32 0, %v1801
        %v1803 = vrot.slane %v1798, %v1802
        %v1804 = vlaneseq
        %v1805 = vshrl.u32 %v1804, 7
        %v1806 = vsub.s32 1, %v1805
        %v1807 = vrot.slane %v1798, %v1806
        %v1810 = vmul.f32 %v1796, %v1803
        %v1811 = vmul.f32 %v1790, %v1807
        %v1812 = vmul.f32 %v1797, %v1803
        %v1813 = vmul.f32 %v1791, %v1807
        %1814 = vrot.lane.b32.xlu0 %v1737, 15
        %v1815 = vpop.permute.xlu0 %1814
        %1816 = vrot.lane.b32.xlu0 %v1739, 15
        %v1817 = vpop.permute.xlu0 %1816
        %1820 = vrot.lane.b32.xlu0 %v1736, 15
        %v1821 = vpop.permute.xlu0 %1820
        %1822 = vrot.lane.b32.xlu0 %v1738, 15
        %v1823 = vpop.permute.xlu0 %1822
        %v1824 = vsel %vm641, %v1821, %v1815
        %v1825 = vsel %vm641, %v1823, %v1817
        %v1830 = vsel %vm641, %v1815, %v1821
        %v1831 = vsel %vm641, %v1817, %v1823
        %v1832 = vld [vmem:[%s650] ss:$8 sm:$0x3]
        %v1834 = vlaneseq
        %v1835 = vshrl.u32 %v1834, 7
        %v1836 = vsub.s32 0, %v1835
        %v1837 = vrot.slane %v1832, %v1836
        %v1838 = vlaneseq
        %v1839 = vshrl.u32 %v1838, 7
        %v1840 = vsub.s32 1, %v1839
        %v1841 = vrot.slane %v1832, %v1840
        %v1844 = vmul.f32 %v1830, %v1837
        %v1845 = vmul.f32 %v1824, %v1841
        %v1846 = vmul.f32 %v1831, %v1837
        %v1847 = vmul.f32 %v1825, %v1841
        %1848 = vrot.lane.b32.xlu0 %v1737, 1
        %v1849 = vpop.permute.xlu0 %1848
        %1850 = vrot.lane.b32.xlu0 %v1739, 1
        %v1851 = vpop.permute.xlu0 %1850
        %1854 = vrot.lane.b32.xlu0 %v1736, 1
        %v1855 = vpop.permute.xlu0 %1854
        %1856 = vrot.lane.b32.xlu0 %v1738, 1
        %v1857 = vpop.permute.xlu0 %1856
        %v1858 = vsel %vm677, %v1855, %v1849
        %v1859 = vsel %vm677, %v1857, %v1851
        %v1864 = vsel %vm677, %v1849, %v1855
        %v1865 = vsel %vm677, %v1851, %v1857
        %v1866 = vld [vmem:[%s686] ss:$8 sm:$0x3]
        %v1868 = vlaneseq
        %v1869 = vshrl.u32 %v1868, 7
        %v1870 = vsub.s32 0, %v1869
        %v1871 = vrot.slane %v1866, %v1870
        %v1872 = vlaneseq
        %v1873 = vshrl.u32 %v1872, 7
        %v1874 = vsub.s32 1, %v1873
        %v1875 = vrot.slane %v1866, %v1874
        %v1878 = vmul.f32 %v1864, %v1871
        %v1879 = vmul.f32 %v1858, %v1875
        %v1880 = vmul.f32 %v1865, %v1871
        %v1881 = vmul.f32 %v1859, %v1875
        %1882 = vrot.lane.b32.xlu0 %v1736, 127
        %v1883 = vpop.permute.xlu0 %1882
        %1884 = vrot.lane.b32.xlu0 %v1737, 127
        %v1885 = vpop.permute.xlu0 %1884
        %1886 = vrot.lane.b32.xlu0 %v1738, 127
        %v1887 = vpop.permute.xlu0 %1886
        %1888 = vrot.lane.b32.xlu0 %v1739, 127
        %v1889 = vpop.permute.xlu0 %1888
        %v1890 = vsel %vm711, %v1883, %v1885
        %v1891 = vsel %vm711, %v1887, %v1889
        %v1898 = vsel %vm711, %v1885, %v1883
        %v1899 = vsel %vm711, %v1889, %v1887
        %v1900 = vld [vmem:[%s722] ss:$8 sm:$0x3]
        %v1902 = vlaneseq
        %v1903 = vshrl.u32 %v1902, 7
        %v1904 = vsub.s32 0, %v1903
        %v1905 = vrot.slane %v1900, %v1904
        %v1906 = vlaneseq
        %v1907 = vshrl.u32 %v1906, 7
        %v1908 = vsub.s32 1, %v1907
        %v1909 = vrot.slane %v1900, %v1908
        %v1912 = vmul.f32 %v1890, %v1905
        %v1913 = vmul.f32 %v1898, %v1909
        %v1914 = vmul.f32 %v1891, %v1905
        %v1915 = vmul.f32 %v1899, %v1909
        %1916 = vrot.lane.b32.xlu0 %v1736, 113
        %v1917 = vpop.permute.xlu0 %1916
        %1918 = vrot.lane.b32.xlu0 %v1737, 113
        %v1919 = vpop.permute.xlu0 %1918
        %1920 = vrot.lane.b32.xlu0 %v1738, 113
        %v1921 = vpop.permute.xlu0 %1920
        %1922 = vrot.lane.b32.xlu0 %v1739, 113
        %v1923 = vpop.permute.xlu0 %1922
        %v1924 = vsel %vm747, %v1917, %v1919
        %v1925 = vsel %vm747, %v1921, %v1923
        %v1932 = vsel %vm747, %v1919, %v1917
        %v1933 = vsel %vm747, %v1923, %v1921
        %v1934 = vld [vmem:[%s758] ss:$8 sm:$0x3]
        %v1936 = vlaneseq
        %v1937 = vshrl.u32 %v1936, 7
        %v1938 = vsub.s32 0, %v1937
        %v1939 = vrot.slane %v1934, %v1938
        %v1940 = vlaneseq
        %v1941 = vshrl.u32 %v1940, 7
        %v1942 = vsub.s32 1, %v1941
        %v1943 = vrot.slane %v1934, %v1942
        %v1946 = vmul.f32 %v1924, %v1939
        %v1947 = vmul.f32 %v1932, %v1943
        %v1948 = vmul.f32 %v1925, %v1939
        %v1949 = vmul.f32 %v1933, %v1943
        %1950 = vrot.lane.b32.xlu0 %v1736, 112
        %v1951 = vpop.permute.xlu0 %1950
        %1952 = vrot.lane.b32.xlu0 %v1737, 112
        %v1953 = vpop.permute.xlu0 %1952
        %1954 = vrot.lane.b32.xlu0 %v1738, 112
        %v1955 = vpop.permute.xlu0 %1954
        %1956 = vrot.lane.b32.xlu0 %v1739, 112
        %v1957 = vpop.permute.xlu0 %1956
        %v1958 = vsel %vm783, %v1951, %v1953
        %v1959 = vsel %vm783, %v1955, %v1957
        %v1966 = vsel %vm783, %v1953, %v1951
        %v1967 = vsel %vm783, %v1957, %v1955
        %v1968 = vld [vmem:[%s794] ss:$8 sm:$0x3]
        %v1970 = vlaneseq
        %v1971 = vshrl.u32 %v1970, 7
        %v1972 = vsub.s32 0, %v1971
        %v1973 = vrot.slane %v1968, %v1972
        %v1974 = vlaneseq
        %v1975 = vshrl.u32 %v1974, 7
        %v1976 = vsub.s32 1, %v1975
        %v1977 = vrot.slane %v1968, %v1976
        %v1980 = vmul.f32 %v1958, %v1973
        %v1981 = vmul.f32 %v1966, %v1977
        %v1982 = vmul.f32 %v1959, %v1973
        %v1983 = vmul.f32 %v1967, %v1977
        %1984 = vrot.lane.b32.xlu0 %v1736, 111
        %v1985 = vpop.permute.xlu0 %1984
        %1986 = vrot.lane.b32.xlu0 %v1737, 111
        %v1987 = vpop.permute.xlu0 %1986
        %1988 = vrot.lane.b32.xlu0 %v1738, 111
        %v1989 = vpop.permute.xlu0 %1988
        %1990 = vrot.lane.b32.xlu0 %v1739, 111
        %v1991 = vpop.permute.xlu0 %1990
        %v1992 = vsel %vm819, %v1985, %v1987
        %v1993 = vsel %vm819, %v1989, %v1991
        %v2000 = vsel %vm819, %v1987, %v1985
        %v2001 = vsel %vm819, %v1991, %v1989
        %v2002 = vld [vmem:[%s830] ss:$8 sm:$0x3]
        %v2004 = vlaneseq
        %v2005 = vshrl.u32 %v2004, 7
        %v2006 = vsub.s32 0, %v2005
        %v2007 = vrot.slane %v2002, %v2006
        %v2008 = vlaneseq
        %v2009 = vshrl.u32 %v2008, 7
        %v2010 = vsub.s32 1, %v2009
        %v2011 = vrot.slane %v2002, %v2010
        %v2014 = vmul.f32 %v1992, %v2007
        %v2015 = vmul.f32 %v2000, %v2011
        %v2016 = vmul.f32 %v1993, %v2007
        %v2017 = vmul.f32 %v2001, %v2011
        %v2018 = vld [vmem:[%s8] sm:$0xff]
        %v2019 = vld [vmem:[%s9] sm:$0xf]
        %2021 = vset.pattern.permute.xlu0 0
        %2022 = vperm.xlu0 %2021, %v2019
        %v2023 = vpop.permute.xlu0 %2022
        %v2026 = vcombine.high %v2018, %v2018
        %v2027 = vsel %vm605, %v2026, 0
        %2029 = vmatprep.subr.mxu0 %v1777
        %2030 = vmatpush1.msra.mxu0 %v1776
        %2031 = vmatprep.subr.mxu0 %v1779
        %2032 = vmatpush1.msra.mxu0 %v1778
        %2033 = vmatprep.subr.mxu0 %v1811
        %2034 = vmatpush1.msra.mxu0 %v1810
        %2035 = vmatprep.subr.mxu0 %v1813
        %2036 = vmatpush1.msra.mxu0 %v1812
        %2037 = vmatprep.subr.mxu0 %v1845
        %2038 = vmatpush1.msra.mxu0 %v1844
        %2039 = vmatprep.subr.mxu0 %v1847
        %2040 = vmatpush1.msra.mxu0 %v1846
        %2041 = vmatprep.subr.mxu0 %v1879
        %2042 = vmatpush1.msra.mxu0 %v1878
        %2043 = vmatprep.subr.mxu0 %v1881
        %2044 = vmatpush1.msra.mxu0 %v1880
        %2045 = vmatprep.subr.mxu0 %v1737
        %2046 = vmatpush1.msra.mxu0 %v1736
        %2047 = vmatprep.subr.mxu0 %v1739
        %2048 = vmatpush1.msra.mxu0 %v1738
        %2049 = vmatprep.subr.mxu0 %v1913
        %2050 = vmatpush1.msra.mxu0 %v1912
        %2051 = vmatprep.subr.mxu0 %v1915
        %2052 = vmatpush1.msra.mxu0 %v1914
        %2053 = vmatprep.subr.mxu0 %v1947
        %2054 = vmatpush1.msra.mxu0 %v1946
        %2055 = vmatprep.subr.mxu0 %v1949
        %2056 = vmatpush1.msra.mxu0 %v1948
        %2057 = vmatprep.subr.mxu0 %v1981
        %2058 = vmatpush1.msra.mxu0 %v1980
        %2059 = vmatprep.subr.mxu0 %v1983
        %2060 = vmatpush1.msra.mxu0 %v1982
        %2061 = vmatprep.subr.mxu0 %v2015
        %2062 = vmatpush1.msra.mxu0 %v2014
        %2063 = vmatprep.subr.mxu0 %v2017
        %2064 = vmatpush1.msra.mxu0 %v2016
        %2065 = vmatprep.subr.mxu0 0.0
        %2066 = vmatpush1.msra.mxu0 0.0
        %2067 = vmatprep.subr.mxu0 0.0
        %2068 = vmatpush1.msra.mxu0 0.0
        %2069 = vmatprep.subr.mxu0 0.0
        %2070 = vmatpush1.msra.mxu0 0.0
        %2071 = vmatprep.subr.mxu0 0.0
        %2072 = vmatpush1.msra.mxu0 0.0
        %2073 = vmatprep.subr.mxu0 0.0
        %2074 = vmatpush1.msra.mxu0 0.0
        %2075 = vmatprep.subr.mxu0 0.0
        %2076 = vmatpush1.msra.mxu0 0.0
        %2077 = vmatprep.subr.mxu0 0.0
        %2078 = vmatpush1.msra.mxu0 0.0
        %2079 = vmatprep.subr.mxu0 0.0
        %2080 = vmatpush1.msra.mxu0 0.0
        %2081 = vmatprep.subr.mxu0 0.0
        %2082 = vmatpush1.msra.mxu0 0.0
        %2083 = vmatprep.subr.mxu0 0.0
        %2084 = vmatpush1.msra.mxu0 0.0
        %2085 = vmatprep.subr.mxu0 0.0
        %2086 = vmatpush1.msra.mxu0 0.0
        %2087 = vmatprep.subr.mxu0 0.0
        %2088 = vmatpush1.msra.mxu0 0.0
        %2089 = vmatprep.subr.mxu0 0.0
        %2090 = vmatpush1.msra.mxu0 0.0
        %2091 = vmatprep.subr.mxu0 0.0
        %2092 = vmatpush1.msra.mxu0 0.0
        %2093 = vmatprep.mubr.f32.mxu0 %v2027
        %2094 = vmatmul.mubr.f32.gmra.mrb[0].mxu0 %v2018
        %v2095 = vpop.f32.mrb[0].mxu0
        %v2096 = vadd.f32 %v2023, %v2095
        %v2097 = vpop.f32.mrb[0].mxu0
        %v2098 = vadd.f32 %v2023, %v2097
        %2099 = vdwg.mxu0
        %v2102 = vrot.slane %v2096, 4
        %v2103 = vrot.slane %v2098, 4
        %2106 = vst [vmem:[#allocation2 + $0x10] sm:$0xf0] %v2102
        %2107 = vst [vmem:[#allocation2 + $0x18] sm:$0xf0] %v2103
        %v2108 = vld [vmem:[#allocation2] sm:$0xff]
        %v2109 = vld [vmem:[#allocation2 + $0x8] sm:$0xff]
        %v2110 = vld [vmem:[#allocation2 + $0x10] sm:$0xff]
        %v2111 = vld [vmem:[#allocation2 + $0x18] sm:$0xff]
        %v2112 = vadd.f32 %v2108, %v2109
        %2113 = vadd.xlane.f32.xlu0 %v2112
        %v2114 = vpop.xlane.xlu0 %2113
        %v2115 = vadd.f32 %v2110, %v2111
        %2116 = vadd.xlane.f32.xlu0 %v2115
        %v2117 = vpop.xlane.xlu0 %2116
        %v2118 = vmul.f32 %v2114, 0.00390625
        %v2119 = vmul.f32 %v2117, 0.00390625
        %v2120 = vsub.f32 %v2108, %v2118
        %v2121 = vsub.f32 %v2109, %v2118
        %v2122 = vsub.f32 %v2110, %v2119
        %v2123 = vsub.f32 %v2111, %v2119
        %v2124 = vmul.f32 %v2120, %v2120
        %v2125 = vmul.f32 %v2121, %v2121
        %v2126 = vmul.f32 %v2122, %v2122
        %v2127 = vmul.f32 %v2123, %v2123
        %v2128 = vadd.f32 %v2124, %v2125
        %2129 = vadd.xlane.f32.xlu0 %v2128
        %v2130 = vpop.xlane.xlu0 %2129
        %v2131 = vadd.f32 %v2126, %v2127
        %2132 = vadd.xlane.f32.xlu0 %v2131
        %v2133 = vpop.xlane.xlu0 %2132
        %v2134 = vmul.f32 %v2130, 0.00390625
        %v2135 = vmul.f32 %v2133, 0.00390625
        %v2136 = vrsqrt.pop %v2134
        %v2137 = vmul.f32 %v2134, %v2136
        %vm2138 = vcmp.eq.f32.partialorder %v2134, inf
        %v2139 = vsel %vm2138, %v2134, %v2137
        %vm2140 = vcmp.eq.f32.partialorder %v2134, 0.0
        %v2141 = vand.u32 %v2134, 2147483648
        %v2142 = vsel %vm2140, %v2141, %v2139
        %v2143 = vrsqrt.pop %v2135
        %v2144 = vmul.f32 %v2135, %v2143
        %vm2145 = vcmp.eq.f32.partialorder %v2135, inf
        %v2146 = vsel %vm2145, %v2135, %v2144
        %vm2147 = vcmp.eq.f32.partialorder %v2135, 0.0
        %v2148 = vand.u32 %v2135, 2147483648
        %v2149 = vsel %vm2147, %v2148, %v2146
        %v2150 = vadd.f32 %v2142, %v2118
        %v2151 = vadd.f32 %v2149, %v2119
        %v2152 = vld [vmem:[%s12] sm:$0xff]
        %v2153 = vld [vmem:[%s12 + $0x8] sm:$0xff]
        %v2154 = vmul.f32 %v2152, %v2150
        %v2155 = vmul.f32 %v2153, %v2151
        %v2156 = vsel %vm677, %v2154, 0.0
        %v2157 = vsel %vm677, %v2155, 0.0
        %v2158 = vadd.f32 %v2156, %v2157
        %v2159 = vrot.slane %v2158, 4
        %v2160 = vadd.f32 %v2158, %v2159
        %v2161 = vrot.slane %v2160, 2
        %v2162 = vadd.f32 %v2160, %v2161
        %v2163 = vrot.slane %v2162, 1
        %v2164 = vadd.f32 %v2162, %v2163
        %v2165 = vld [vmem:[#allocation3] sm:$0x1]
        %v2166 = vadd.f32 %v2164, %v2165
        %v2167 = vmax.f32 %v2166, 0.0
        %v2168 = vld [vmem:[%s14] sm:$0xff]
        %v2169 = vld [vmem:[%s14 + $0x8] sm:$0xff]
        %v2170 = vlaneseq
        %v2171 = vshrl.u32 %v2170, 7
        %v2172 = vsub.s32 0, %v2171
        %v2173 = vrot.slane %v2167, %v2172
        %v2174 = vmul.f32 %v2168, %v2173
        %v2175 = vmul.f32 %v2169, %v2173
        %v2176 = vadd.f32 %v2174, 0.0
        %v2177 = vadd.f32 %v2175, 0.0
        %v2178 = vld [vmem:[%s15] sm:$0xff]
        %v2179 = vld [vmem:[%s15 + $0x8] sm:$0xff]
        %v2180 = vadd.f32 %v2176, %v2178
        %v2181 = vadd.f32 %v2177, %v2179
        %v2182 = vxor.u32 %v2180, 2147483648
        %v2183 = vxor.u32 %v2181, 2147483648
        %v2184 = vmul.f32 %v2182, 1.442695
        %v2185 = vpow.pop %v2184
        %v2186 = vmul.f32 %v2183, 1.442695
        %v2187 = vpow.pop %v2186
        %v2188 = vadd.f32 %v2185, 1.0
        %v2189 = vadd.f32 %v2187, 1.0
        %v2190 = vrcp.pop %v2188
        %v2191 = vmul.f32 1.0, %v2190
        %v2192 = vrcp.pop %v2189
        %v2193 = vmul.f32 1.0, %v2192
        %2195 = vset.pattern.permute.xlu0 0
        %2196 = vperm.xlu0 %2195, %v2191
        %v2197 = vpop.permute.xlu0 %2196
        %2200 = vset.pattern.permute.xlu0 0
        %2201 = vperm.xlu0 %2200, %v2193
        %v2202 = vpop.permute.xlu0 %2201
        %v2204 = vmul.f32 %v2108, %v2197
        %v2205 = vmul.f32 %v2109, %v2197
        %v2206 = vmul.f32 %v2110, %v2202
        %v2207 = vmul.f32 %v2111, %v2202
        %v2208 = vld [vmem:[%s10] sm:$0xff]
        %v2209 = vld [vmem:[%s10 + $0x8] sm:$0xff]
        %v2210 = vld [vmem:[%s11] sm:$0xff]
        %v2211 = vld [vmem:[%s11 + $0x8] sm:$0xff]
        %2213 = vset.pattern.permute.xlu0 0
        %2214 = vperm.xlu0 %2213, %v2210
        %v2215 = vpop.permute.xlu0 %2214
        %2218 = vset.pattern.permute.xlu0 0
        %2219 = vperm.xlu0 %2218, %v2211
        %v2220 = vpop.permute.xlu0 %2219
        %v2223 = vsel %vm605, %v2208, 0
        %v2226 = vsel %vm605, %v2209, 0
        %2228 = vmatprep.subr.mxu0 %v2205
        %2229 = vmatpush1.msra.mxu0 %v2204
        %2230 = vmatprep.subr.mxu0 %v2207
        %2231 = vmatpush1.msra.mxu0 %v2206
        %2232 = vmatprep.subr.mxu0 0.0
        %2233 = vmatpush1.msra.mxu0 0.0
        %2234 = vmatprep.subr.mxu0 0.0
        %2235 = vmatpush1.msra.mxu0 0.0
        %2236 = vmatprep.subr.mxu0 0.0
        %2237 = vmatpush1.msra.mxu0 0.0
        %2238 = vmatprep.subr.mxu0 0.0
        %2239 = vmatpush1.msra.mxu0 0.0
        %2240 = vmatprep.subr.mxu0 0.0
        %2241 = vmatpush1.msra.mxu0 0.0
        %2242 = vmatprep.subr.mxu0 0.0
        %2243 = vmatpush1.msra.mxu0 0.0
        %2244 = vmatprep.subr.mxu0 0.0
        %2245 = vmatpush1.msra.mxu0 0.0
        %2246 = vmatprep.subr.mxu0 0.0
        %2247 = vmatpush1.msra.mxu0 0.0
        %2248 = vmatprep.subr.mxu0 0.0
        %2249 = vmatpush1.msra.mxu0 0.0
        %2250 = vmatprep.subr.mxu0 0.0
        %2251 = vmatpush1.msra.mxu0 0.0
        %2252 = vmatprep.subr.mxu0 0.0
        %2253 = vmatpush1.msra.mxu0 0.0
        %2254 = vmatprep.subr.mxu0 0.0
        %2255 = vmatpush1.msra.mxu0 0.0
        %2256 = vmatprep.subr.mxu0 0.0
        %2257 = vmatpush1.msra.mxu0 0.0
        %2258 = vmatprep.subr.mxu0 0.0
        %2259 = vmatpush1.msra.mxu0 0.0
        %2260 = vmatprep.subr.mxu0 0.0
        %2261 = vmatpush1.msra.mxu0 0.0
        %2262 = vmatprep.subr.mxu0 0.0
        %2263 = vmatpush1.msra.mxu0 0.0
        %2264 = vmatprep.subr.mxu0 0.0
        %2265 = vmatpush1.msra.mxu0 0.0
        %2266 = vmatprep.subr.mxu0 0.0
        %2267 = vmatpush1.msra.mxu0 0.0
        %2268 = vmatprep.subr.mxu0 0.0
        %2269 = vmatpush1.msra.mxu0 0.0
        %2270 = vmatprep.subr.mxu0 0.0
        %2271 = vmatpush1.msra.mxu0 0.0
        %2272 = vmatprep.subr.mxu0 0.0
        %2273 = vmatpush1.msra.mxu0 0.0
        %2274 = vmatprep.subr.mxu0 0.0
        %2275 = vmatpush1.msra.mxu0 0.0
        %2276 = vmatprep.subr.mxu0 0.0
        %2277 = vmatpush1.msra.mxu0 0.0
        %2278 = vmatprep.subr.mxu0 0.0
        %2279 = vmatpush1.msra.mxu0 0.0
        %2280 = vmatprep.subr.mxu0 0.0
        %2281 = vmatpush1.msra.mxu0 0.0
        %2282 = vmatprep.subr.mxu0 0.0
        %2283 = vmatpush1.msra.mxu0 0.0
        %2284 = vmatprep.subr.mxu0 0.0
        %2285 = vmatpush1.msra.mxu0 0.0
        %2286 = vmatprep.subr.mxu0 0.0
        %2287 = vmatpush1.msra.mxu0 0.0
        %2288 = vmatprep.subr.mxu0 0.0
        %2289 = vmatpush1.msra.mxu0 0.0
        %2290 = vmatprep.subr.mxu0 0.0
        %2291 = vmatpush1.msra.mxu0 0.0
        %2292 = vmatprep.mubr.f32.mxu0 0.0
        %2293 = vmatmul.mubr.f32.gmra.mrb[0].mxu0 %v2223
        %v2294 = vpop.f32.mrb[0].mxu0
        %v2295 = vadd.f32 %v2215, %v2294
        %v2296 = vpop.f32.mrb[0].mxu0
        %v2297 = vadd.f32 %v2215, %v2296
        %2298 = vmatprep.mubr.f32.mxu0 0.0
        %2299 = vmatmul.mubr.f32.gmra.mrb[0].mxu0 %v2226
        %v2300 = vpop.f32.mrb[0].mxu0
        %v2301 = vadd.f32 %v2220, %v2300
        %v2302 = vpop.f32.mrb[0].mxu0
        %v2303 = vadd.f32 %v2220, %v2302
        %2304 = vdwg.mxu0
        %v2305 = vadd.f32 %v2295, %v552
        %v2306 = vadd.f32 %v2297, %v553
        %v2307 = vadd.f32 %v2301, %v554
        %v2308 = vadd.f32 %v2303, %v555
        %2309 = vst [vmem:[%s546] sm:$0xff] %v2305
        %2310 = vst [vmem:[%s546 + $0x8] sm:$0xff] %v2306
        %2311 = vst [vmem:[%s546 + $0x10] sm:$0xff] %v2307
        %2312 = vst [vmem:[%s546 + $0x18] sm:$0xff] %v2308
        %s2313 = sand.u32 %s383, 1
        %s2314 = scalar_lea.sflag [#allocation6], %s2313
        %s2315 = sand.u32 %s383, 1
        %s2316 = smul.addr %s2315, 32
        %s2317 = scalar_lea.vmem [#allocation9], %s2316
        // Predicated region
        $region93: #{tpu_custom_call.1} parent=83 // pred_check
          %p2318 = pneg %p393
        $region94: #{tpu_custom_call.1} parent=83 // pred_check_branch
          %2320 = sbr.rel (%p2318) target = $region96
        $region95: #{tpu_custom_call.1} parent=83 // pred_region
          %s2322 = ssub.s32 512, 512
          %2323 = vsyncadd %s2314, %s2322
          %s2324 = smul.addr %s34, 4
          %s2325 = smul.addr %s2324, 128
          %s2326 = scalar_lea.hbm %s16, %s2325
          %s2327 = sshll.u32 %s2317, 4
          %s2328 = int_to_ptr.vmem [resolvable:$true] %s2327
          %2333 = dma.vmem_to_hbm [thread:$0]  %s2328, 512, %s2326, %s2314, 256, 256, 16
        $region96: #{tpu_custom_call.1} parent=83 // pred_fallthru
          _
      $region84: #{tpu_custom_call.1} parent=5 // pred_fallthru
        _
      %p2334 = scmp.le.s32.totalorder 2, %s29
      // Predicated region
      $region97: #{tpu_custom_call.1} parent=5 // pred_check
        %p2335 = pneg %p2334
      $region98: #{tpu_custom_call.1} parent=5 // pred_check_branch
        %2337 = sbr.rel (%p2335) target = $region100
      $region99: #{tpu_custom_call.1} parent=5 // pred_region
        %s2338 = ssub.s32 %s29, 2
        // Predicated region
        $region101: #{tpu_custom_call.1} parent=99 // pred_check
          %p2339 = pneg %p399
        $region102: #{tpu_custom_call.1} parent=99 // pred_check_branch
          %2341 = sbr.rel (%p2339) target = $region104
        $region103: #{tpu_custom_call.1} parent=99 // pred_region
          %s2342 = sand.u32 %s384, 1
          %s2343 = scalar_lea.sflag [#allocation6], %s2342
          %s2344 = sand.u32 %s384, 1
          %s2345 = smul.addr %s2344, 32
          %s2346 = scalar_lea.vmem [#allocation9], %s2345
          %2347 = dma.done %s2343, 512
        $region104: #{tpu_custom_call.1} parent=99 // pred_fallthru
          _
      $region100: #{tpu_custom_call.1} parent=5 // pred_fallthru
        _
    $region6: #{tpu_custom_call.1} parent=1 // loop_footer
      %s33 = sadd.s32 1, %s29
    $region7: #{tpu_custom_call.1} parent=1 // loop_footer_branch
      %28 = sbr.rel target = $region3
    $region8: #{tpu_custom_call.1} parent=1 // loop_exit
      _
    %2348 = vsyncpa [#allocation5], 1
    %s2349 = scalar_lea.sflag [#allocation5], 1
    %2350 = vsyncpa %s2349, 1
    %2351 = vsyncpa [#allocation8], 1
    %2352 = vsyncpa [#allocation6], 1
    %s2353 = scalar_lea.sflag [#allocation6], 1
    %2354 = vsyncpa %s2353, 1

</llo_original>
